<compile_context>
chip_gen: v5e
topology: v5e:2x2
jax: 0.10.0
libtpu: 0.0.40
codegen_flags: <defaults>
</compile_context>

<pallas_src>
import functools

import jax
import jax.numpy as jnp
from jax.experimental import pallas as pl
from jax.experimental.pallas import tpu as pltpu

# ---- config (small, consistent with the module) ----
BATCH = 2
SEQ = 8
DIM = 32
HEADS = 4
MLP_SIZE = 64
NUM_LAYERS = 2
EPS = 1e-6   # the module uses nn.LayerNorm(dim, eps=1e-06)


# ----------------- in-kernel math helpers -----------------
def _erf(x):
    # Abramowitz & Stegun 7.1.26 (max abs err ~1.5e-7); avoids relying on
    # lax.erf lowering inside Mosaic.
    a1, a2, a3, a4, a5 = 0.254829592, -0.284496736, 1.421413741, -1.453152027, 1.061405429
    p = 0.3275911
    s = jnp.where(x >= 0.0, 1.0, -1.0)
    ax = jnp.abs(x)
    t = 1.0 / (1.0 + p * ax)
    poly = ((((a5 * t + a4) * t + a3) * t + a2) * t + a1) * t
    return s * (1.0 - poly * jnp.exp(-ax * ax))


def _gelu(x):
    # nn.GELU() default = exact (erf-based) GELU
    return 0.5 * x * (1.0 + _erf(x * 0.7071067811865476))


def _layernorm(x, g, b):
    # x: (N, D); g, b: (1, D); eps=1e-6, biased variance (PyTorch semantics)
    mu = jnp.mean(x, axis=-1, keepdims=True)
    xc = x - mu
    var = jnp.mean(xc * xc, axis=-1, keepdims=True)
    return xc * jax.lax.rsqrt(var + EPS) * g + b


# ----------------- fused Pallas kernel -----------------
def fused_encoder_kernel(x_ref, p_ref, y_ref, attn_ref, *,
                         batch, seq, dim, heads, mlp, num_layers):
    d = dim
    hd = d // heads
    n = batch * seq
    rpl = 2 * d + mlp + 8          # rows per layer in the packed param slab

    x = x_ref[...]                 # (B*S, D): batch folded into sublanes

    def bh_stack(mat, col0, width):
        # (B*S, lanes) -> (B*H, S, width); group g = b*heads + h.
        # Only static sublane/lane slices + a leading-axis stack (cheap relayout).
        parts = []
        for b in range(batch):
            for h in range(heads):
                parts.append(mat[b * seq:(b + 1) * seq,
                                 col0 + h * width: col0 + (h + 1) * width])
        return jnp.stack(parts, axis=0)

    for layer in range(num_layers):        # static unroll (NUM_LAYERS = 2)
        base = layer * rpl
        vrow = base + 2 * d + mlp          # start of the vector (bias/LN) rows
        w_all = p_ref[base: base + d, :]                        # (D, 2D + H*D)
        w_fc1 = p_ref[base + d: base + 2 * d, 0:mlp]            # (D, mlp)
        w_fc2 = p_ref[base + 2 * d: base + 2 * d + mlp, 0:d]    # (mlp, D)
        ln1_g = p_ref[vrow + 0: vrow + 1, 0:d]                  # (1, D)
        ln1_b = p_ref[vrow + 1: vrow + 2, 0:d]
        b_all = p_ref[vrow + 2: vrow + 3, :]                    # (1, 2D + H*D)
        b_out = p_ref[vrow + 3: vrow + 4, 0:d]
        ln2_g = p_ref[vrow + 4: vrow + 5, 0:d]
        ln2_b = p_ref[vrow + 5: vrow + 6, 0:d]
        b_fc1 = p_ref[vrow + 6: vrow + 7, 0:mlp]
        b_fc2 = p_ref[vrow + 7: vrow + 8, 0:d]

        # ---- LN1 + fused lane-dense Q|K|V' projection: ONE (N,D)@(D,192) matmul,
        #      ONE (1,192) bias add (scale folded into Q, W_out folded into V') ----
        x1 = _layernorm(x, ln1_g, ln1_b)
        qkv = jnp.dot(x1, w_all, preferred_element_type=jnp.float32) + b_all   # (N, 192)

        # ---- batched attention over all (batch, head) groups at once ----
        q3 = bh_stack(qkv, 0, hd)                   # (B*H, S, hd)
        k3 = bh_stack(qkv, heads * hd, hd)          # (B*H, S, hd)
        v3 = bh_stack(qkv, 2 * heads * hd, d)       # (B*H, S, D)  (out-proj folded in)

        s = jnp.einsum("gsd,gtd->gst", q3, k3,
                       preferred_element_type=jnp.float32)       # (B*H, S, S)
        s = s - jnp.max(s, axis=-1, keepdims=True)
        e = jnp.exp(s)
        # exact normalization: these probabilities are also the exported attention maps
        p = e / jnp.sum(e, axis=-1, keepdims=True)
        o = jnp.einsum("gst,gtd->gsd", p, v3,
                       preferred_element_type=jnp.float32)       # (B*H, S, D)

        # head reduction: one reshape + sum; residual bias add once
        attn_out = o.reshape(batch, heads, seq, d).sum(axis=1).reshape(n, d) + b_out
        # PyTorch MHA default: need_weights=True, average_attn_weights=True
        # -> one store per layer (was B narrow stores)
        attn_ref[layer] = jnp.mean(p.reshape(batch, heads, seq, seq), axis=1)

        # ---- residual 1, LN2, MLP, residual 2 ----
        xr = x + attn_out
        x2 = _layernorm(xr, ln2_g, ln2_b)
        h1 = _gelu(jnp.dot(x2, w_fc1, preferred_element_type=jnp.float32) + b_fc1)
        x = xr + jnp.dot(h1, w_fc2, preferred_element_type=jnp.float32) + b_fc2

    # ---- final LayerNorm ----
    gf = p_ref[num_layers * rpl + 0: num_layers * rpl + 1, 0:d]
    bf = p_ref[num_layers * rpl + 1: num_layers * rpl + 2, 0:d]
    y_ref[...] = _layernorm(x, gf, bf)


# ----------------- one-time (hoisted) weight folding & packing -----------------
def prepare_params(params, heads=HEADS):
    """Fold 1/sqrt(hd) into Q, fold W_out into per-head V, and pack every weight,
    bias and LN parameter into ONE (rows, 2D + H*D) f32 slab.

    Call this ONCE per parameter set; it must NOT be in the per-forward path.
    Per-layer row layout (rows_per_layer = 2D + mlp + 8):
      [0, D)          W_all = [Wq*scale | Wk | per-head Wv@Wout]   (D, 2D+H*D)
      [D, 2D)         W_fc1                                        (D, mlp)
      [2D, 2D+mlp)    W_fc2                                        (mlp, D)
      2D+mlp + 0..7   ln1_g, ln1_b, b_all, b_out, ln2_g, ln2_b, b_fc1, b_fc2
    followed by 2 rows: ln_f_g, ln_f_b.
    """
    layers = params["layers"]
    D = layers[0]["w_in"].shape[0]
    hd = D // heads
    lanes = 2 * D + heads * D
    scale = 1.0 / float(hd) ** 0.5

    def padded(a):
        a = jnp.asarray(a, jnp.float32)
        if a.ndim == 1:
            a = a.reshape(1, -1)
        return jnp.pad(a, ((0, 0), (0, lanes - a.shape[1])))

    blocks = []
    for lp in layers:
        w_in, b_in, w_out = lp["w_in"], lp["b_in"][0], lp["w_out"]
        wq = w_in[:, :D] * scale                 # head h lives at lanes [h*hd,(h+1)*hd)
        wk = w_in[:, D:2 * D]
        wv = w_in[:, 2 * D:]
        bq = b_in[:D] * scale
        bk = b_in[D:2 * D]
        bv = b_in[2 * D:]
        wvo = jnp.concatenate(
            [wv[:, h * hd:(h + 1) * hd] @ w_out[h * hd:(h + 1) * hd, :]
             for h in range(heads)], axis=1)                           # (D, H*D)
        bvo = jnp.concatenate(
            [bv[h * hd:(h + 1) * hd] @ w_out[h * hd:(h + 1) * hd, :]
             for h in range(heads)], axis=0)                           # (H*D,)
        w_all = jnp.concatenate([wq, wk, wvo], axis=1)                 # (D, lanes)
        b_all = jnp.concatenate([bq, bk, bvo], axis=0)                 # (lanes,)

        rows = [padded(w_all), padded(lp["w_fc1"]), padded(lp["w_fc2"]),
                padded(lp["ln1_g"]), padded(lp["ln1_b"]),
                padded(b_all), padded(lp["b_out"]),
                padded(lp["ln2_g"]), padded(lp["ln2_b"]),
                padded(lp["b_fc1"]), padded(lp["b_fc2"])]
        blocks.append(jnp.concatenate(rows, axis=0))

    blocks.append(jnp.concatenate([padded(params["ln_f_g"]),
                                   padded(params["ln_f_b"])], axis=0))
    packed = jnp.concatenate(blocks, axis=0)
    pad_rows = (-packed.shape[0]) % 8
    if pad_rows:
        packed = jnp.pad(packed, ((0, pad_rows), (0, 0)))
    return packed


# ----------------- forward wrapper (single fused pallas_call, 2 in / 2 out DMAs) ---
def transformer_encoder(x, packed_params, *, heads=HEADS, num_layers=NUM_LAYERS,
                        mlp=MLP_SIZE):
    B, S, D = x.shape
    n = B * S
    L = num_layers

    kernel = functools.partial(fused_encoder_kernel, batch=B, seq=S, dim=D,
                               heads=heads, mlp=mlp, num_layers=L)

    y, attn = pl.pallas_call(
        kernel,
        out_shape=(jax.ShapeDtypeStruct((n, D), jnp.float32),
                   jax.ShapeDtypeStruct((L, B, S, S), jnp.float32)),
        grid=(1,),                                   # single fused step, one TC
        in_specs=[pl.BlockSpec((n, D), lambda i: (0, 0)),
                  pl.BlockSpec(packed_params.shape, lambda i: (0, 0))],
        out_specs=(pl.BlockSpec((n, D), lambda i: (0, 0)),
                   pl.BlockSpec((L, B, S, S), lambda i: (0, 0, 0, 0))),
        compiler_params=pltpu.CompilerParams(dimension_semantics=("arbitrary",)),
    )(x.reshape(n, D), packed_params)

    return y.reshape(B, S, D), [attn[l] for l in range(L)]


# ----------------- deterministic parameter init (canonical, pre-transposed layout) --
def init_params(key, dim, heads, num_layers, mlp_size):
    layers = []
    for _ in range(num_layers):
        keys = jax.random.split(key, 9)
        key = keys[0]
        lp = {
            "ln1_g": jnp.ones((1, dim), jnp.float32),
            "ln1_b": jnp.zeros((1, dim), jnp.float32),
            "w_in":  0.05 * jax.random.normal(keys[1], (dim, 3 * dim), jnp.float32),
            "b_in":  0.01 * jax.random.normal(keys[2], (1, 3 * dim), jnp.float32),
            "w_out": 0.05 * jax.random.normal(keys[3], (dim, dim), jnp.float32),
            "b_out": 0.01 * jax.random.normal(keys[4], (1, dim), jnp.float32),
            "ln2_g": jnp.ones((1, dim), jnp.float32),
            "ln2_b": jnp.zeros((1, dim), jnp.float32),
            "w_fc1": 0.05 * jax.random.normal(keys[5], (dim, mlp_size), jnp.float32),
            "b_fc1": 0.01 * jax.random.normal(keys[6], (1, mlp_size), jnp.float32),
            "w_fc2": 0.05 * jax.random.normal(keys[7], (mlp_size, dim), jnp.float32),
            "b_fc2": 0.01 * jax.random.normal(keys[8], (1, dim), jnp.float32),
        }
        layers.append(lp)
    return {
        "layers": layers,
        "ln_f_g": jnp.ones((1, dim), jnp.float32),
        "ln_f_b": jnp.zeros((1, dim), jnp.float32),
    }


# ----------------- pure-JAX reference (module semantics) for a correctness check ----
def reference_forward(x, params, heads=HEADS):
    B, S, D = x.shape
    hd = D // heads
    scale = 1.0 / float(hd) ** 0.5

    def ln(v, g, b):
        mu = v.mean(-1, keepdims=True)
        var = ((v - mu) ** 2).mean(-1, keepdims=True)
        return (v - mu) / jnp.sqrt(var + EPS) * g + b

    attn_ws = []
    for lp in params["layers"]:
        x1 = ln(x, lp["ln1_g"], lp["ln1_b"])
        qkv = x1 @ lp["w_in"] + lp["b_in"]
        q, k, v = qkv[..., :D], qkv[..., D:2 * D], qkv[..., 2 * D:]
        q = q.reshape(B, S, heads, hd).transpose(0, 2, 1, 3) * scale
        k = k.reshape(B, S, heads, hd).transpose(0, 2, 1, 3)
        v = v.reshape(B, S, heads, hd).transpose(0, 2, 1, 3)
        s = jnp.einsum("bhid,bhjd->bhij", q, k)
        p = jax.nn.softmax(s, axis=-1)
        o = jnp.einsum("bhij,bhjd->bhid", p, v)
        o = o.transpose(0, 2, 1, 3).reshape(B, S, D)
        attn_out = o @ lp["w_out"] + lp["b_out"]
        xr = x + attn_out
        x2 = ln(xr, lp["ln2_g"], lp["ln2_b"])
        h = jax.nn.gelu(x2 @ lp["w_fc1"] + lp["b_fc1"], approximate=False)
        x = xr + (h @ lp["w_fc2"] + lp["b_fc2"])
        attn_ws.append(p.mean(axis=1))
    x = ln(x, params["ln_f_g"], params["ln_f_b"])
    return x, attn_ws


if __name__ == "__main__":
    key = jax.random.PRNGKey(0)
    k_x, k_p = jax.random.split(key)
    x = jax.random.normal(k_x, (BATCH, SEQ, DIM), jnp.float32)
    params = init_params(k_p, DIM, HEADS, NUM_LAYERS, MLP_SIZE)

    # Hoisted, one-time weight folding/packing — NOT in the per-call path.
    packed = jax.block_until_ready(prepare_params(params, HEADS))

    fwd = jax.jit(transformer_encoder)
    out, attn_weights = fwd(x, packed)
    jax.block_until_ready(out)
    jax.block_until_ready(attn_weights)

    assert out.shape == (BATCH, SEQ, DIM)
    assert len(attn_weights) == NUM_LAYERS
    assert all(w.shape == (BATCH, SEQ, SEQ) for w in attn_weights)

    # numeric check vs. plain-JAX reference.  Softmax is now exact, so tolerance
    # is tightened 4x vs. the previous version; the remaining slack covers the
    # TPU default (bf16-pass) matmul precision difference between the folded
    # kernel math and the unfolded XLA reference.
    ref_out, ref_attn = reference_forward(x, params, HEADS)
    assert jnp.allclose(out, ref_out, atol=5e-3, rtol=5e-3)
    for w, rw in zip(attn_weights, ref_attn):
        assert jnp.allclose(w, rw, atol=5e-3, rtol=5e-3)

    print("KERNEL_OK")
</pallas_src>

<mosaic_0001>
module attributes {stable_mosaic.version = 11 : i64} {
  func.func @fused_encoder_kernel(%arg0: i32, %arg1: memref<16x32xf32, #tpu.memory_space<vmem>>, %arg2: memref<280x192xf32, #tpu.memory_space<vmem>>, %arg3: memref<16x32xf32, #tpu.memory_space<vmem>>, %arg4: memref<2x2x8x8xf32, #tpu.memory_space<vmem>>) attributes {dimension_semantics = [#tpu.dimension_semantics<arbitrary>], iteration_bounds = array<i64: 1>, scalar_prefetch = 0 : i64, scratch_operands = 0 : i64, tpu.core_type = #tpu.core_type<tc>, window_params = [{pipeline_mode = #tpu.pipeline_mode<synchronous>, transform_indices = @transform_0, window_bounds = array<i64: 16, 32>}, {pipeline_mode = #tpu.pipeline_mode<synchronous>, transform_indices = @transform_1, window_bounds = array<i64: 280, 192>}, {pipeline_mode = #tpu.pipeline_mode<synchronous>, transform_indices = @transform_2, window_bounds = array<i64: 16, 32>}, {pipeline_mode = #tpu.pipeline_mode<synchronous>, transform_indices = @transform_3, window_bounds = array<i64: 2, 2, 8, 8>}]} {
    %c0 = arith.constant 0 : index
    %c0_0 = arith.constant 0 : index
    %0 = vector.load %arg1[%c0, %c0_0] : memref<16x32xf32, #tpu.memory_space<vmem>>, vector<16x32xf32>
    %c0_1 = arith.constant 0 : index
    %c0_2 = arith.constant 0 : index
    %1 = vector.load %arg2[%c0_1, %c0_2] : memref<280x192xf32, #tpu.memory_space<vmem>>, vector<32x192xf32>
    %c32 = arith.constant 32 : index
    %c0_3 = arith.constant 0 : index
    %2 = vector.load %arg2[%c32, %c0_3] : memref<280x192xf32, #tpu.memory_space<vmem>>, vector<32x64xf32>
    %c64 = arith.constant 64 : index
    %c0_4 = arith.constant 0 : index
    %3 = vector.load %arg2[%c64, %c0_4] : memref<280x192xf32, #tpu.memory_space<vmem>>, vector<64x32xf32>
    %c128 = arith.constant 128 : index
    %c0_5 = arith.constant 0 : index
    %4 = vector.load %arg2[%c128, %c0_5] : memref<280x192xf32, #tpu.memory_space<vmem>>, vector<1x32xf32>
    %c129 = arith.constant 129 : index
    %c0_6 = arith.constant 0 : index
    %5 = vector.load %arg2[%c129, %c0_6] : memref<280x192xf32, #tpu.memory_space<vmem>>, vector<1x32xf32>
    %c130 = arith.constant 130 : index
    %c0_7 = arith.constant 0 : index
    %6 = vector.load %arg2[%c130, %c0_7] : memref<280x192xf32, #tpu.memory_space<vmem>>, vector<1x192xf32>
    %c131 = arith.constant 131 : index
    %c0_8 = arith.constant 0 : index
    %7 = vector.load %arg2[%c131, %c0_8] : memref<280x192xf32, #tpu.memory_space<vmem>>, vector<1x32xf32>
    %c132 = arith.constant 132 : index
    %c0_9 = arith.constant 0 : index
    %8 = vector.load %arg2[%c132, %c0_9] : memref<280x192xf32, #tpu.memory_space<vmem>>, vector<1x32xf32>
    %c133 = arith.constant 133 : index
    %c0_10 = arith.constant 0 : index
    %9 = vector.load %arg2[%c133, %c0_10] : memref<280x192xf32, #tpu.memory_space<vmem>>, vector<1x32xf32>
    %c134 = arith.constant 134 : index
    %c0_11 = arith.constant 0 : index
    %10 = vector.load %arg2[%c134, %c0_11] : memref<280x192xf32, #tpu.memory_space<vmem>>, vector<1x64xf32>
    %c135 = arith.constant 135 : index
    %c0_12 = arith.constant 0 : index
    %11 = vector.load %arg2[%c135, %c0_12] : memref<280x192xf32, #tpu.memory_space<vmem>>, vector<1x32xf32>
    %cst = arith.constant dense<0.000000e+00> : vector<16xf32>
    %12 = vector.multi_reduction <add>, %0, %cst [1] : vector<16x32xf32> to vector<16xf32>
    %13 = vector.shape_cast %12 : vector<16xf32> to vector<16x1xf32>
    %cst_13 = arith.constant 3.200000e+01 : f32
    %14 = vector.broadcast %cst_13 : f32 to vector<16x1xf32>
    %15 = arith.divf %13, %14 : vector<16x1xf32>
    %16 = vector.broadcast %15 : vector<16x1xf32> to vector<16x32xf32>
    %17 = arith.subf %0, %16 : vector<16x32xf32>
    %18 = arith.mulf %17, %17 : vector<16x32xf32>
    %cst_14 = arith.constant dense<0.000000e+00> : vector<16xf32>
    %19 = vector.multi_reduction <add>, %18, %cst_14 [1] : vector<16x32xf32> to vector<16xf32>
    %20 = vector.shape_cast %19 : vector<16xf32> to vector<16x1xf32>
    %cst_15 = arith.constant 3.200000e+01 : f32
    %21 = vector.broadcast %cst_15 : f32 to vector<16x1xf32>
    %22 = arith.divf %20, %21 : vector<16x1xf32>
    %cst_16 = arith.constant 9.99999997E-7 : f32
    %23 = vector.broadcast %cst_16 : f32 to vector<16x1xf32>
    %24 = arith.addf %22, %23 : vector<16x1xf32>
    %25 = math.rsqrt %24 : vector<16x1xf32>
    %26 = vector.broadcast %25 : vector<16x1xf32> to vector<16x32xf32>
    %27 = arith.mulf %17, %26 : vector<16x32xf32>
    %28 = vector.broadcast %4 : vector<1x32xf32> to vector<16x32xf32>
    %29 = arith.mulf %27, %28 : vector<16x32xf32>
    %30 = vector.broadcast %5 : vector<1x32xf32> to vector<16x32xf32>
    %31 = arith.addf %29, %30 : vector<16x32xf32>
    %cst_17 = arith.constant dense<0.000000e+00> : vector<16x192xf32>
    %32 = tpu.matmul %31, %1, %cst_17 {dimension_numbers = #tpu.dot_dimension_numbers<[1], [0], [0], [1], [0, 0, 1, 1], [], []>} : vector<16x32xf32>, vector<32x192xf32>, vector<16x192xf32> -> vector<16x192xf32>
    %33 = vector.broadcast %6 : vector<1x192xf32> to vector<16x192xf32>
    %34 = arith.addf %32, %33 : vector<16x192xf32>
    %35 = vector.extract_strided_slice %34 {offsets = [0, 0], sizes = [8, 8], strides = [1, 1]} : vector<16x192xf32> to vector<8x8xf32>
    %36 = vector.extract_strided_slice %34 {offsets = [0, 8], sizes = [8, 8], strides = [1, 1]} : vector<16x192xf32> to vector<8x8xf32>
    %37 = vector.extract_strided_slice %34 {offsets = [0, 16], sizes = [8, 8], strides = [1, 1]} : vector<16x192xf32> to vector<8x8xf32>
    %38 = vector.extract_strided_slice %34 {offsets = [0, 24], sizes = [8, 8], strides = [1, 1]} : vector<16x192xf32> to vector<8x8xf32>
    %39 = vector.extract_strided_slice %34 {offsets = [8, 0], sizes = [8, 8], strides = [1, 1]} : vector<16x192xf32> to vector<8x8xf32>
    %40 = vector.extract_strided_slice %34 {offsets = [8, 8], sizes = [8, 8], strides = [1, 1]} : vector<16x192xf32> to vector<8x8xf32>
    %41 = vector.extract_strided_slice %34 {offsets = [8, 16], sizes = [8, 8], strides = [1, 1]} : vector<16x192xf32> to vector<8x8xf32>
    %42 = vector.extract_strided_slice %34 {offsets = [8, 24], sizes = [8, 8], strides = [1, 1]} : vector<16x192xf32> to vector<8x8xf32>
    %43 = vector.shape_cast %35 : vector<8x8xf32> to vector<1x8x8xf32>
    %44 = vector.shape_cast %36 : vector<8x8xf32> to vector<1x8x8xf32>
    %45 = vector.shape_cast %37 : vector<8x8xf32> to vector<1x8x8xf32>
    %46 = vector.shape_cast %38 : vector<8x8xf32> to vector<1x8x8xf32>
    %47 = vector.shape_cast %39 : vector<8x8xf32> to vector<1x8x8xf32>
    %48 = vector.shape_cast %40 : vector<8x8xf32> to vector<1x8x8xf32>
    %49 = vector.shape_cast %41 : vector<8x8xf32> to vector<1x8x8xf32>
    %50 = vector.shape_cast %42 : vector<8x8xf32> to vector<1x8x8xf32>
    %51 = tpu.concatenate %43, %44, %45, %46, %47, %48, %49, %50 in 0 : vector<1x8x8xf32>, vector<1x8x8xf32>, vector<1x8x8xf32>, vector<1x8x8xf32>, vector<1x8x8xf32>, vector<1x8x8xf32>, vector<1x8x8xf32>, vector<1x8x8xf32> -> vector<8x8x8xf32>
    %52 = vector.extract_strided_slice %34 {offsets = [0, 32], sizes = [8, 8], strides = [1, 1]} : vector<16x192xf32> to vector<8x8xf32>
    %53 = vector.extract_strided_slice %34 {offsets = [0, 40], sizes = [8, 8], strides = [1, 1]} : vector<16x192xf32> to vector<8x8xf32>
    %54 = vector.extract_strided_slice %34 {offsets = [0, 48], sizes = [8, 8], strides = [1, 1]} : vector<16x192xf32> to vector<8x8xf32>
    %55 = vector.extract_strided_slice %34 {offsets = [0, 56], sizes = [8, 8], strides = [1, 1]} : vector<16x192xf32> to vector<8x8xf32>
    %56 = vector.extract_strided_slice %34 {offsets = [8, 32], sizes = [8, 8], strides = [1, 1]} : vector<16x192xf32> to vector<8x8xf32>
    %57 = vector.extract_strided_slice %34 {offsets = [8, 40], sizes = [8, 8], strides = [1, 1]} : vector<16x192xf32> to vector<8x8xf32>
    %58 = vector.extract_strided_slice %34 {offsets = [8, 48], sizes = [8, 8], strides = [1, 1]} : vector<16x192xf32> to vector<8x8xf32>
    %59 = vector.extract_strided_slice %34 {offsets = [8, 56], sizes = [8, 8], strides = [1, 1]} : vector<16x192xf32> to vector<8x8xf32>
    %60 = vector.shape_cast %52 : vector<8x8xf32> to vector<1x8x8xf32>
    %61 = vector.shape_cast %53 : vector<8x8xf32> to vector<1x8x8xf32>
    %62 = vector.shape_cast %54 : vector<8x8xf32> to vector<1x8x8xf32>
    %63 = vector.shape_cast %55 : vector<8x8xf32> to vector<1x8x8xf32>
    %64 = vector.shape_cast %56 : vector<8x8xf32> to vector<1x8x8xf32>
    %65 = vector.shape_cast %57 : vector<8x8xf32> to vector<1x8x8xf32>
    %66 = vector.shape_cast %58 : vector<8x8xf32> to vector<1x8x8xf32>
    %67 = vector.shape_cast %59 : vector<8x8xf32> to vector<1x8x8xf32>
    %68 = tpu.concatenate %60, %61, %62, %63, %64, %65, %66, %67 in 0 : vector<1x8x8xf32>, vector<1x8x8xf32>, vector<1x8x8xf32>, vector<1x8x8xf32>, vector<1x8x8xf32>, vector<1x8x8xf32>, vector<1x8x8xf32>, vector<1x8x8xf32> -> vector<8x8x8xf32>
    %69 = vector.extract_strided_slice %34 {offsets = [0, 64], sizes = [8, 32], strides = [1, 1]} : vector<16x192xf32> to vector<8x32xf32>
    %70 = vector.extract_strided_slice %34 {offsets = [0, 96], sizes = [8, 32], strides = [1, 1]} : vector<16x192xf32> to vector<8x32xf32>
    %71 = vector.extract_strided_slice %34 {offsets = [0, 128], sizes = [8, 32], strides = [1, 1]} : vector<16x192xf32> to vector<8x32xf32>
    %72 = vector.extract_strided_slice %34 {offsets = [0, 160], sizes = [8, 32], strides = [1, 1]} : vector<16x192xf32> to vector<8x32xf32>
    %73 = vector.extract_strided_slice %34 {offsets = [8, 64], sizes = [8, 32], strides = [1, 1]} : vector<16x192xf32> to vector<8x32xf32>
    %74 = vector.extract_strided_slice %34 {offsets = [8, 96], sizes = [8, 32], strides = [1, 1]} : vector<16x192xf32> to vector<8x32xf32>
    %75 = vector.extract_strided_slice %34 {offsets = [8, 128], sizes = [8, 32], strides = [1, 1]} : vector<16x192xf32> to vector<8x32xf32>
    %76 = vector.extract_strided_slice %34 {offsets = [8, 160], sizes = [8, 32], strides = [1, 1]} : vector<16x192xf32> to vector<8x32xf32>
    %77 = vector.shape_cast %69 : vector<8x32xf32> to vector<1x8x32xf32>
    %78 = vector.shape_cast %70 : vector<8x32xf32> to vector<1x8x32xf32>
    %79 = vector.shape_cast %71 : vector<8x32xf32> to vector<1x8x32xf32>
    %80 = vector.shape_cast %72 : vector<8x32xf32> to vector<1x8x32xf32>
    %81 = vector.shape_cast %73 : vector<8x32xf32> to vector<1x8x32xf32>
    %82 = vector.shape_cast %74 : vector<8x32xf32> to vector<1x8x32xf32>
    %83 = vector.shape_cast %75 : vector<8x32xf32> to vector<1x8x32xf32>
    %84 = vector.shape_cast %76 : vector<8x32xf32> to vector<1x8x32xf32>
    %85 = tpu.concatenate %77, %78, %79, %80, %81, %82, %83, %84 in 0 : vector<1x8x32xf32>, vector<1x8x32xf32>, vector<1x8x32xf32>, vector<1x8x32xf32>, vector<1x8x32xf32>, vector<1x8x32xf32>, vector<1x8x32xf32>, vector<1x8x32xf32> -> vector<8x8x32xf32>
    "tpu.trace_start"() <{level = 10 : i32, message = "gsd,gtd->gst"}> : () -> ()
    %cst_18 = arith.constant dense<0.000000e+00> : vector<8x8x8xf32>
    %86 = tpu.matmul %51, %68, %cst_18 {dimension_numbers = #tpu.dot_dimension_numbers<[2], [2], [1], [1], [0, 0, 0, 1, 1, 1], [0], [0]>} : vector<8x8x8xf32>, vector<8x8x8xf32>, vector<8x8x8xf32> -> vector<8x8x8xf32>
    "tpu.trace_stop"() : () -> ()
    %cst_19 = arith.constant dense<0xFF800000> : vector<8x8xf32>
    %87 = vector.multi_reduction <maximumf>, %86, %cst_19 [2] : vector<8x8x8xf32> to vector<8x8xf32>
    %88 = vector.shape_cast %87 : vector<8x8xf32> to vector<8x8x1xf32>
    %89 = vector.broadcast %88 : vector<8x8x1xf32> to vector<8x8x8xf32>
    %90 = arith.subf %86, %89 : vector<8x8x8xf32>
    %91 = math.exp %90 : vector<8x8x8xf32>
    %cst_20 = arith.constant dense<0.000000e+00> : vector<8x8xf32>
    %92 = vector.multi_reduction <add>, %91, %cst_20 [2] : vector<8x8x8xf32> to vector<8x8xf32>
    %93 = vector.shape_cast %92 : vector<8x8xf32> to vector<8x8x1xf32>
    %94 = vector.broadcast %93 : vector<8x8x1xf32> to vector<8x8x8xf32>
    %95 = arith.divf %91, %94 : vector<8x8x8xf32>
    "tpu.trace_start"() <{level = 10 : i32, message = "gst,gtd->gsd"}> : () -> ()
    %cst_21 = arith.constant dense<0.000000e+00> : vector<8x8x32xf32>
    %96 = tpu.matmul %95, %85, %cst_21 {dimension_numbers = #tpu.dot_dimension_numbers<[2], [1], [1], [2], [0, 0, 0, 1, 1, 2], [0], [0]>} : vector<8x8x8xf32>, vector<8x8x32xf32>, vector<8x8x32xf32> -> vector<8x8x32xf32>
    "tpu.trace_stop"() : () -> ()
    %97 = vector.shape_cast %96 : vector<8x8x32xf32> to vector<2x4x8x32xf32>
    %cst_22 = arith.constant dense<0.000000e+00> : vector<2x8x32xf32>
    %98 = vector.multi_reduction <add>, %97, %cst_22 [1] : vector<2x4x8x32xf32> to vector<2x8x32xf32>
    %99 = vector.shape_cast %98 : vector<2x8x32xf32> to vector<16x32xf32>
    %100 = vector.broadcast %7 : vector<1x32xf32> to vector<16x32xf32>
    %101 = arith.addf %99, %100 : vector<16x32xf32>
    %102 = vector.shape_cast %95 : vector<8x8x8xf32> to vector<2x4x8x8xf32>
    %cst_23 = arith.constant dense<0.000000e+00> : vector<2x8x8xf32>
    %103 = vector.multi_reduction <add>, %102, %cst_23 [1] : vector<2x4x8x8xf32> to vector<2x8x8xf32>
    %cst_24 = arith.constant 4.000000e+00 : f32
    %104 = vector.broadcast %cst_24 : f32 to vector<2x8x8xf32>
    %105 = arith.divf %103, %104 : vector<2x8x8xf32>
    %c0_25 = arith.constant 0 : index
    %c0_26 = arith.constant 0 : index
    %c0_27 = arith.constant 0 : index
    %c0_28 = arith.constant 0 : index
    %106 = vector.load %arg4[%c0_25, %c0_26, %c0_27, %c0_28] : memref<2x2x8x8xf32, #tpu.memory_space<vmem>>, vector<1x2x8x8xf32>
    %107 = vector.shape_cast %106 : vector<1x2x8x8xf32> to vector<2x8x8xf32>
    %108 = vector.shape_cast %105 : vector<2x8x8xf32> to vector<1x2x8x8xf32>
    tpu.vector_store %arg4[%c0_25, %c0_26, %c0_27, %c0_28], %108 {strides = array<i32>} : memref<2x2x8x8xf32, #tpu.memory_space<vmem>>, vector<1x2x8x8xf32>,
    %109 = arith.addf %0, %101 : vector<16x32xf32>
    %cst_29 = arith.constant dense<0.000000e+00> : vector<16xf32>
    %110 = vector.multi_reduction <add>, %109, %cst_29 [1] : vector<16x32xf32> to vector<16xf32>
    %111 = vector.shape_cast %110 : vector<16xf32> to vector<16x1xf32>
    %cst_30 = arith.constant 3.200000e+01 : f32
    %112 = vector.broadcast %cst_30 : f32 to vector<16x1xf32>
    %113 = arith.divf %111, %112 : vector<16x1xf32>
    %114 = vector.broadcast %113 : vector<16x1xf32> to vector<16x32xf32>
    %115 = arith.subf %109, %114 : vector<16x32xf32>
    %116 = arith.mulf %115, %115 : vector<16x32xf32>
    %cst_31 = arith.constant dense<0.000000e+00> : vector<16xf32>
    %117 = vector.multi_reduction <add>, %116, %cst_31 [1] : vector<16x32xf32> to vector<16xf32>
    %118 = vector.shape_cast %117 : vector<16xf32> to vector<16x1xf32>
    %cst_32 = arith.constant 3.200000e+01 : f32
    %119 = vector.broadcast %cst_32 : f32 to vector<16x1xf32>
    %120 = arith.divf %118, %119 : vector<16x1xf32>
    %cst_33 = arith.constant 9.99999997E-7 : f32
    %121 = vector.broadcast %cst_33 : f32 to vector<16x1xf32>
    %122 = arith.addf %120, %121 : vector<16x1xf32>
    %123 = math.rsqrt %122 : vector<16x1xf32>
    %124 = vector.broadcast %123 : vector<16x1xf32> to vector<16x32xf32>
    %125 = arith.mulf %115, %124 : vector<16x32xf32>
    %126 = vector.broadcast %8 : vector<1x32xf32> to vector<16x32xf32>
    %127 = arith.mulf %125, %126 : vector<16x32xf32>
    %128 = vector.broadcast %9 : vector<1x32xf32> to vector<16x32xf32>
    %129 = arith.addf %127, %128 : vector<16x32xf32>
    %cst_34 = arith.constant dense<0.000000e+00> : vector<16x64xf32>
    %130 = tpu.matmul %129, %2, %cst_34 {dimension_numbers = #tpu.dot_dimension_numbers<[1], [0], [0], [1], [0, 0, 1, 1], [], []>} : vector<16x32xf32>, vector<32x64xf32>, vector<16x64xf32> -> vector<16x64xf32>
    %131 = vector.broadcast %10 : vector<1x64xf32> to vector<16x64xf32>
    %132 = arith.addf %130, %131 : vector<16x64xf32>
    %cst_35 = arith.constant 5.000000e-01 : f32
    %133 = vector.broadcast %cst_35 : f32 to vector<16x64xf32>
    %134 = arith.mulf %133, %132 : vector<16x64xf32>
    %cst_36 = arith.constant 0.707106769 : f32
    %135 = vector.broadcast %cst_36 : f32 to vector<16x64xf32>
    %136 = arith.mulf %132, %135 : vector<16x64xf32>
    %cst_37 = arith.constant 0.000000e+00 : f32
    %137 = vector.broadcast %cst_37 : f32 to vector<16x64xf32>
    %138 = arith.cmpf oge, %136, %137 : vector<16x64xf32>
    %cst_38 = arith.constant 1.000000e+00 : f32
    %cst_39 = arith.constant -1.000000e+00 : f32
    %139 = vector.broadcast %cst_38 : f32 to vector<16x64xf32>
    %140 = vector.broadcast %cst_39 : f32 to vector<16x64xf32>
    %141 = arith.select %138, %139, %140 : vector<16x64xi1>, vector<16x64xf32>
    %142 = math.absf %136 : vector<16x64xf32>
    %cst_40 = arith.constant 0.327591091 : f32
    %143 = vector.broadcast %cst_40 : f32 to vector<16x64xf32>
    %144 = arith.mulf %143, %142 : vector<16x64xf32>
    %cst_41 = arith.constant 1.000000e+00 : f32
    %145 = vector.broadcast %cst_41 : f32 to vector<16x64xf32>
    %146 = arith.addf %145, %144 : vector<16x64xf32>
    %cst_42 = arith.constant 1.000000e+00 : f32
    %147 = vector.broadcast %cst_42 : f32 to vector<16x64xf32>
    %148 = arith.divf %147, %146 : vector<16x64xf32>
    %cst_43 = arith.constant 1.06140542 : f32
    %149 = vector.broadcast %cst_43 : f32 to vector<16x64xf32>
    %150 = arith.mulf %149, %148 : vector<16x64xf32>
    %cst_44 = arith.constant -1.45315206 : f32
    %151 = vector.broadcast %cst_44 : f32 to vector<16x64xf32>
    %152 = arith.addf %150, %151 : vector<16x64xf32>
    %153 = arith.mulf %152, %148 : vector<16x64xf32>
    %cst_45 = arith.constant 1.42141378 : f32
    %154 = vector.broadcast %cst_45 : f32 to vector<16x64xf32>
    %155 = arith.addf %153, %154 : vector<16x64xf32>
    %156 = arith.mulf %155, %148 : vector<16x64xf32>
    %cst_46 = arith.constant -0.284496725 : f32
    %157 = vector.broadcast %cst_46 : f32 to vector<16x64xf32>
    %158 = arith.addf %156, %157 : vector<16x64xf32>
    %159 = arith.mulf %158, %148 : vector<16x64xf32>
    %cst_47 = arith.constant 0.254829586 : f32
    %160 = vector.broadcast %cst_47 : f32 to vector<16x64xf32>
    %161 = arith.addf %159, %160 : vector<16x64xf32>
    %162 = arith.mulf %161, %148 : vector<16x64xf32>
    %cst_48 = arith.constant 0.000000e+00 : f32
    %163 = vector.broadcast %cst_48 : f32 to vector<16x64xf32>
    %164 = arith.subf %163, %142 : vector<16x64xf32>
    %165 = arith.mulf %164, %142 : vector<16x64xf32>
    %166 = math.exp %165 : vector<16x64xf32>
    %167 = arith.mulf %162, %166 : vector<16x64xf32>
    %cst_49 = arith.constant 1.000000e+00 : f32
    %168 = vector.broadcast %cst_49 : f32 to vector<16x64xf32>
    %169 = arith.subf %168, %167 : vector<16x64xf32>
    %170 = arith.mulf %141, %169 : vector<16x64xf32>
    %cst_50 = arith.constant 1.000000e+00 : f32
    %171 = vector.broadcast %cst_50 : f32 to vector<16x64xf32>
    %172 = arith.addf %171, %170 : vector<16x64xf32>
    %173 = arith.mulf %134, %172 : vector<16x64xf32>
    %cst_51 = arith.constant dense<0.000000e+00> : vector<16x32xf32>
    %174 = tpu.matmul %173, %3, %cst_51 {dimension_numbers = #tpu.dot_dimension_numbers<[1], [0], [0], [1], [0, 0, 1, 1], [], []>} : vector<16x64xf32>, vector<64x32xf32>, vector<16x32xf32> -> vector<16x32xf32>
    %175 = arith.addf %109, %174 : vector<16x32xf32>
    %176 = vector.broadcast %11 : vector<1x32xf32> to vector<16x32xf32>
    %177 = arith.addf %175, %176 : vector<16x32xf32>
    %c136 = arith.constant 136 : index
    %c0_52 = arith.constant 0 : index
    %178 = vector.load %arg2[%c136, %c0_52] : memref<280x192xf32, #tpu.memory_space<vmem>>, vector<32x192xf32>
    %c168 = arith.constant 168 : index
    %c0_53 = arith.constant 0 : index
    %179 = vector.load %arg2[%c168, %c0_53] : memref<280x192xf32, #tpu.memory_space<vmem>>, vector<32x64xf32>
    %c200 = arith.constant 200 : index
    %c0_54 = arith.constant 0 : index
    %180 = vector.load %arg2[%c200, %c0_54] : memref<280x192xf32, #tpu.memory_space<vmem>>, vector<64x32xf32>
    %c264 = arith.constant 264 : index
    %c0_55 = arith.constant 0 : index
    %181 = vector.load %arg2[%c264, %c0_55] : memref<280x192xf32, #tpu.memory_space<vmem>>, vector<1x32xf32>
    %c265 = arith.constant 265 : index
    %c0_56 = arith.constant 0 : index
    %182 = vector.load %arg2[%c265, %c0_56] : memref<280x192xf32, #tpu.memory_space<vmem>>, vector<1x32xf32>
    %c266 = arith.constant 266 : index
    %c0_57 = arith.constant 0 : index
    %183 = vector.load %arg2[%c266, %c0_57] : memref<280x192xf32, #tpu.memory_space<vmem>>, vector<1x192xf32>
    %c267 = arith.constant 267 : index
    %c0_58 = arith.constant 0 : index
    %184 = vector.load %arg2[%c267, %c0_58] : memref<280x192xf32, #tpu.memory_space<vmem>>, vector<1x32xf32>
    %c268 = arith.constant 268 : index
    %c0_59 = arith.constant 0 : index
    %185 = vector.load %arg2[%c268, %c0_59] : memref<280x192xf32, #tpu.memory_space<vmem>>, vector<1x32xf32>
    %c269 = arith.constant 269 : index
    %c0_60 = arith.constant 0 : index
    %186 = vector.load %arg2[%c269, %c0_60] : memref<280x192xf32, #tpu.memory_space<vmem>>, vector<1x32xf32>
    %c270 = arith.constant 270 : index
    %c0_61 = arith.constant 0 : index
    %187 = vector.load %arg2[%c270, %c0_61] : memref<280x192xf32, #tpu.memory_space<vmem>>, vector<1x64xf32>
    %c271 = arith.constant 271 : index
    %c0_62 = arith.constant 0 : index
    %188 = vector.load %arg2[%c271, %c0_62] : memref<280x192xf32, #tpu.memory_space<vmem>>, vector<1x32xf32>
    %cst_63 = arith.constant dense<0.000000e+00> : vector<16xf32>
    %189 = vector.multi_reduction <add>, %177, %cst_63 [1] : vector<16x32xf32> to vector<16xf32>
    %190 = vector.shape_cast %189 : vector<16xf32> to vector<16x1xf32>
    %cst_64 = arith.constant 3.200000e+01 : f32
    %191 = vector.broadcast %cst_64 : f32 to vector<16x1xf32>
    %192 = arith.divf %190, %191 : vector<16x1xf32>
    %193 = vector.broadcast %192 : vector<16x1xf32> to vector<16x32xf32>
    %194 = arith.subf %177, %193 : vector<16x32xf32>
    %195 = arith.mulf %194, %194 : vector<16x32xf32>
    %cst_65 = arith.constant dense<0.000000e+00> : vector<16xf32>
    %196 = vector.multi_reduction <add>, %195, %cst_65 [1] : vector<16x32xf32> to vector<16xf32>
    %197 = vector.shape_cast %196 : vector<16xf32> to vector<16x1xf32>
    %cst_66 = arith.constant 3.200000e+01 : f32
    %198 = vector.broadcast %cst_66 : f32 to vector<16x1xf32>
    %199 = arith.divf %197, %198 : vector<16x1xf32>
    %cst_67 = arith.constant 9.99999997E-7 : f32
    %200 = vector.broadcast %cst_67 : f32 to vector<16x1xf32>
    %201 = arith.addf %199, %200 : vector<16x1xf32>
    %202 = math.rsqrt %201 : vector<16x1xf32>
    %203 = vector.broadcast %202 : vector<16x1xf32> to vector<16x32xf32>
    %204 = arith.mulf %194, %203 : vector<16x32xf32>
    %205 = vector.broadcast %181 : vector<1x32xf32> to vector<16x32xf32>
    %206 = arith.mulf %204, %205 : vector<16x32xf32>
    %207 = vector.broadcast %182 : vector<1x32xf32> to vector<16x32xf32>
    %208 = arith.addf %206, %207 : vector<16x32xf32>
    %cst_68 = arith.constant dense<0.000000e+00> : vector<16x192xf32>
    %209 = tpu.matmul %208, %178, %cst_68 {dimension_numbers = #tpu.dot_dimension_numbers<[1], [0], [0], [1], [0, 0, 1, 1], [], []>} : vector<16x32xf32>, vector<32x192xf32>, vector<16x192xf32> -> vector<16x192xf32>
    %210 = vector.broadcast %183 : vector<1x192xf32> to vector<16x192xf32>
    %211 = arith.addf %209, %210 : vector<16x192xf32>
    %212 = vector.extract_strided_slice %211 {offsets = [0, 0], sizes = [8, 8], strides = [1, 1]} : vector<16x192xf32> to vector<8x8xf32>
    %213 = vector.extract_strided_slice %211 {offsets = [0, 8], sizes = [8, 8], strides = [1, 1]} : vector<16x192xf32> to vector<8x8xf32>
    %214 = vector.extract_strided_slice %211 {offsets = [0, 16], sizes = [8, 8], strides = [1, 1]} : vector<16x192xf32> to vector<8x8xf32>
    %215 = vector.extract_strided_slice %211 {offsets = [0, 24], sizes = [8, 8], strides = [1, 1]} : vector<16x192xf32> to vector<8x8xf32>
    %216 = vector.extract_strided_slice %211 {offsets = [8, 0], sizes = [8, 8], strides = [1, 1]} : vector<16x192xf32> to vector<8x8xf32>
    %217 = vector.extract_strided_slice %211 {offsets = [8, 8], sizes = [8, 8], strides = [1, 1]} : vector<16x192xf32> to vector<8x8xf32>
    %218 = vector.extract_strided_slice %211 {offsets = [8, 16], sizes = [8, 8], strides = [1, 1]} : vector<16x192xf32> to vector<8x8xf32>
    %219 = vector.extract_strided_slice %211 {offsets = [8, 24], sizes = [8, 8], strides = [1, 1]} : vector<16x192xf32> to vector<8x8xf32>
    %220 = vector.shape_cast %212 : vector<8x8xf32> to vector<1x8x8xf32>
    %221 = vector.shape_cast %213 : vector<8x8xf32> to vector<1x8x8xf32>
    %222 = vector.shape_cast %214 : vector<8x8xf32> to vector<1x8x8xf32>
    %223 = vector.shape_cast %215 : vector<8x8xf32> to vector<1x8x8xf32>
    %224 = vector.shape_cast %216 : vector<8x8xf32> to vector<1x8x8xf32>
    %225 = vector.shape_cast %217 : vector<8x8xf32> to vector<1x8x8xf32>
    %226 = vector.shape_cast %218 : vector<8x8xf32> to vector<1x8x8xf32>
    %227 = vector.shape_cast %219 : vector<8x8xf32> to vector<1x8x8xf32>
    %228 = tpu.concatenate %220, %221, %222, %223, %224, %225, %226, %227 in 0 : vector<1x8x8xf32>, vector<1x8x8xf32>, vector<1x8x8xf32>, vector<1x8x8xf32>, vector<1x8x8xf32>, vector<1x8x8xf32>, vector<1x8x8xf32>, vector<1x8x8xf32> -> vector<8x8x8xf32>
    %229 = vector.extract_strided_slice %211 {offsets = [0, 32], sizes = [8, 8], strides = [1, 1]} : vector<16x192xf32> to vector<8x8xf32>
    %230 = vector.extract_strided_slice %211 {offsets = [0, 40], sizes = [8, 8], strides = [1, 1]} : vector<16x192xf32> to vector<8x8xf32>
    %231 = vector.extract_strided_slice %211 {offsets = [0, 48], sizes = [8, 8], strides = [1, 1]} : vector<16x192xf32> to vector<8x8xf32>
    %232 = vector.extract_strided_slice %211 {offsets = [0, 56], sizes = [8, 8], strides = [1, 1]} : vector<16x192xf32> to vector<8x8xf32>
    %233 = vector.extract_strided_slice %211 {offsets = [8, 32], sizes = [8, 8], strides = [1, 1]} : vector<16x192xf32> to vector<8x8xf32>
    %234 = vector.extract_strided_slice %211 {offsets = [8, 40], sizes = [8, 8], strides = [1, 1]} : vector<16x192xf32> to vector<8x8xf32>
    %235 = vector.extract_strided_slice %211 {offsets = [8, 48], sizes = [8, 8], strides = [1, 1]} : vector<16x192xf32> to vector<8x8xf32>
    %236 = vector.extract_strided_slice %211 {offsets = [8, 56], sizes = [8, 8], strides = [1, 1]} : vector<16x192xf32> to vector<8x8xf32>
    %237 = vector.shape_cast %229 : vector<8x8xf32> to vector<1x8x8xf32>
    %238 = vector.shape_cast %230 : vector<8x8xf32> to vector<1x8x8xf32>
    %239 = vector.shape_cast %231 : vector<8x8xf32> to vector<1x8x8xf32>
    %240 = vector.shape_cast %232 : vector<8x8xf32> to vector<1x8x8xf32>
    %241 = vector.shape_cast %233 : vector<8x8xf32> to vector<1x8x8xf32>
    %242 = vector.shape_cast %234 : vector<8x8xf32> to vector<1x8x8xf32>
    %243 = vector.shape_cast %235 : vector<8x8xf32> to vector<1x8x8xf32>
    %244 = vector.shape_cast %236 : vector<8x8xf32> to vector<1x8x8xf32>
    %245 = tpu.concatenate %237, %238, %239, %240, %241, %242, %243, %244 in 0 : vector<1x8x8xf32>, vector<1x8x8xf32>, vector<1x8x8xf32>, vector<1x8x8xf32>, vector<1x8x8xf32>, vector<1x8x8xf32>, vector<1x8x8xf32>, vector<1x8x8xf32> -> vector<8x8x8xf32>
    %246 = vector.extract_strided_slice %211 {offsets = [0, 64], sizes = [8, 32], strides = [1, 1]} : vector<16x192xf32> to vector<8x32xf32>
    %247 = vector.extract_strided_slice %211 {offsets = [0, 96], sizes = [8, 32], strides = [1, 1]} : vector<16x192xf32> to vector<8x32xf32>
    %248 = vector.extract_strided_slice %211 {offsets = [0, 128], sizes = [8, 32], strides = [1, 1]} : vector<16x192xf32> to vector<8x32xf32>
    %249 = vector.extract_strided_slice %211 {offsets = [0, 160], sizes = [8, 32], strides = [1, 1]} : vector<16x192xf32> to vector<8x32xf32>
    %250 = vector.extract_strided_slice %211 {offsets = [8, 64], sizes = [8, 32], strides = [1, 1]} : vector<16x192xf32> to vector<8x32xf32>
    %251 = vector.extract_strided_slice %211 {offsets = [8, 96], sizes = [8, 32], strides = [1, 1]} : vector<16x192xf32> to vector<8x32xf32>
    %252 = vector.extract_strided_slice %211 {offsets = [8, 128], sizes = [8, 32], strides = [1, 1]} : vector<16x192xf32> to vector<8x32xf32>
    %253 = vector.extract_strided_slice %211 {offsets = [8, 160], sizes = [8, 32], strides = [1, 1]} : vector<16x192xf32> to vector<8x32xf32>
    %254 = vector.shape_cast %246 : vector<8x32xf32> to vector<1x8x32xf32>
    %255 = vector.shape_cast %247 : vector<8x32xf32> to vector<1x8x32xf32>
    %256 = vector.shape_cast %248 : vector<8x32xf32> to vector<1x8x32xf32>
    %257 = vector.shape_cast %249 : vector<8x32xf32> to vector<1x8x32xf32>
    %258 = vector.shape_cast %250 : vector<8x32xf32> to vector<1x8x32xf32>
    %259 = vector.shape_cast %251 : vector<8x32xf32> to vector<1x8x32xf32>
    %260 = vector.shape_cast %252 : vector<8x32xf32> to vector<1x8x32xf32>
    %261 = vector.shape_cast %253 : vector<8x32xf32> to vector<1x8x32xf32>
    %262 = tpu.concatenate %254, %255, %256, %257, %258, %259, %260, %261 in 0 : vector<1x8x32xf32>, vector<1x8x32xf32>, vector<1x8x32xf32>, vector<1x8x32xf32>, vector<1x8x32xf32>, vector<1x8x32xf32>, vector<1x8x32xf32>, vector<1x8x32xf32> -> vector<8x8x32xf32>
    "tpu.trace_start"() <{level = 10 : i32, message = "gsd,gtd->gst"}> : () -> ()
    %cst_69 = arith.constant dense<0.000000e+00> : vector<8x8x8xf32>
    %263 = tpu.matmul %228, %245, %cst_69 {dimension_numbers = #tpu.dot_dimension_numbers<[2], [2], [1], [1], [0, 0, 0, 1, 1, 1], [0], [0]>} : vector<8x8x8xf32>, vector<8x8x8xf32>, vector<8x8x8xf32> -> vector<8x8x8xf32>
    "tpu.trace_stop"() : () -> ()
    %cst_70 = arith.constant dense<0xFF800000> : vector<8x8xf32>
    %264 = vector.multi_reduction <maximumf>, %263, %cst_70 [2] : vector<8x8x8xf32> to vector<8x8xf32>
    %265 = vector.shape_cast %264 : vector<8x8xf32> to vector<8x8x1xf32>
    %266 = vector.broadcast %265 : vector<8x8x1xf32> to vector<8x8x8xf32>
    %267 = arith.subf %263, %266 : vector<8x8x8xf32>
    %268 = math.exp %267 : vector<8x8x8xf32>
    %cst_71 = arith.constant dense<0.000000e+00> : vector<8x8xf32>
    %269 = vector.multi_reduction <add>, %268, %cst_71 [2] : vector<8x8x8xf32> to vector<8x8xf32>
    %270 = vector.shape_cast %269 : vector<8x8xf32> to vector<8x8x1xf32>
    %271 = vector.broadcast %270 : vector<8x8x1xf32> to vector<8x8x8xf32>
    %272 = arith.divf %268, %271 : vector<8x8x8xf32>
    "tpu.trace_start"() <{level = 10 : i32, message = "gst,gtd->gsd"}> : () -> ()
    %cst_72 = arith.constant dense<0.000000e+00> : vector<8x8x32xf32>
    %273 = tpu.matmul %272, %262, %cst_72 {dimension_numbers = #tpu.dot_dimension_numbers<[2], [1], [1], [2], [0, 0, 0, 1, 1, 2], [0], [0]>} : vector<8x8x8xf32>, vector<8x8x32xf32>, vector<8x8x32xf32> -> vector<8x8x32xf32>
    "tpu.trace_stop"() : () -> ()
    %274 = vector.shape_cast %273 : vector<8x8x32xf32> to vector<2x4x8x32xf32>
    %cst_73 = arith.constant dense<0.000000e+00> : vector<2x8x32xf32>
    %275 = vector.multi_reduction <add>, %274, %cst_73 [1] : vector<2x4x8x32xf32> to vector<2x8x32xf32>
    %276 = vector.shape_cast %275 : vector<2x8x32xf32> to vector<16x32xf32>
    %277 = vector.broadcast %184 : vector<1x32xf32> to vector<16x32xf32>
    %278 = arith.addf %276, %277 : vector<16x32xf32>
    %279 = vector.shape_cast %272 : vector<8x8x8xf32> to vector<2x4x8x8xf32>
    %cst_74 = arith.constant dense<0.000000e+00> : vector<2x8x8xf32>
    %280 = vector.multi_reduction <add>, %279, %cst_74 [1] : vector<2x4x8x8xf32> to vector<2x8x8xf32>
    %cst_75 = arith.constant 4.000000e+00 : f32
    %281 = vector.broadcast %cst_75 : f32 to vector<2x8x8xf32>
    %282 = arith.divf %280, %281 : vector<2x8x8xf32>
    %c1 = arith.constant 1 : index
    %c0_76 = arith.constant 0 : index
    %c0_77 = arith.constant 0 : index
    %c0_78 = arith.constant 0 : index
    %283 = vector.load %arg4[%c1, %c0_76, %c0_77, %c0_78] : memref<2x2x8x8xf32, #tpu.memory_space<vmem>>, vector<1x2x8x8xf32>
    %284 = vector.shape_cast %283 : vector<1x2x8x8xf32> to vector<2x8x8xf32>
    %285 = vector.shape_cast %282 : vector<2x8x8xf32> to vector<1x2x8x8xf32>
    tpu.vector_store %arg4[%c1, %c0_76, %c0_77, %c0_78], %285 {strides = array<i32>} : memref<2x2x8x8xf32, #tpu.memory_space<vmem>>, vector<1x2x8x8xf32>,
    %286 = arith.addf %177, %278 : vector<16x32xf32>
    %cst_79 = arith.constant dense<0.000000e+00> : vector<16xf32>
    %287 = vector.multi_reduction <add>, %286, %cst_79 [1] : vector<16x32xf32> to vector<16xf32>
    %288 = vector.shape_cast %287 : vector<16xf32> to vector<16x1xf32>
    %cst_80 = arith.constant 3.200000e+01 : f32
    %289 = vector.broadcast %cst_80 : f32 to vector<16x1xf32>
    %290 = arith.divf %288, %289 : vector<16x1xf32>
    %291 = vector.broadcast %290 : vector<16x1xf32> to vector<16x32xf32>
    %292 = arith.subf %286, %291 : vector<16x32xf32>
    %293 = arith.mulf %292, %292 : vector<16x32xf32>
    %cst_81 = arith.constant dense<0.000000e+00> : vector<16xf32>
    %294 = vector.multi_reduction <add>, %293, %cst_81 [1] : vector<16x32xf32> to vector<16xf32>
    %295 = vector.shape_cast %294 : vector<16xf32> to vector<16x1xf32>
    %cst_82 = arith.constant 3.200000e+01 : f32
    %296 = vector.broadcast %cst_82 : f32 to vector<16x1xf32>
    %297 = arith.divf %295, %296 : vector<16x1xf32>
    %cst_83 = arith.constant 9.99999997E-7 : f32
    %298 = vector.broadcast %cst_83 : f32 to vector<16x1xf32>
    %299 = arith.addf %297, %298 : vector<16x1xf32>
    %300 = math.rsqrt %299 : vector<16x1xf32>
    %301 = vector.broadcast %300 : vector<16x1xf32> to vector<16x32xf32>
    %302 = arith.mulf %292, %301 : vector<16x32xf32>
    %303 = vector.broadcast %185 : vector<1x32xf32> to vector<16x32xf32>
    %304 = arith.mulf %302, %303 : vector<16x32xf32>
    %305 = vector.broadcast %186 : vector<1x32xf32> to vector<16x32xf32>
    %306 = arith.addf %304, %305 : vector<16x32xf32>
    %cst_84 = arith.constant dense<0.000000e+00> : vector<16x64xf32>
    %307 = tpu.matmul %306, %179, %cst_84 {dimension_numbers = #tpu.dot_dimension_numbers<[1], [0], [0], [1], [0, 0, 1, 1], [], []>} : vector<16x32xf32>, vector<32x64xf32>, vector<16x64xf32> -> vector<16x64xf32>
    %308 = vector.broadcast %187 : vector<1x64xf32> to vector<16x64xf32>
    %309 = arith.addf %307, %308 : vector<16x64xf32>
    %cst_85 = arith.constant 5.000000e-01 : f32
    %310 = vector.broadcast %cst_85 : f32 to vector<16x64xf32>
    %311 = arith.mulf %310, %309 : vector<16x64xf32>
    %cst_86 = arith.constant 0.707106769 : f32
    %312 = vector.broadcast %cst_86 : f32 to vector<16x64xf32>
    %313 = arith.mulf %309, %312 : vector<16x64xf32>
    %cst_87 = arith.constant 0.000000e+00 : f32
    %314 = vector.broadcast %cst_87 : f32 to vector<16x64xf32>
    %315 = arith.cmpf oge, %313, %314 : vector<16x64xf32>
    %cst_88 = arith.constant 1.000000e+00 : f32
    %cst_89 = arith.constant -1.000000e+00 : f32
    %316 = vector.broadcast %cst_88 : f32 to vector<16x64xf32>
    %317 = vector.broadcast %cst_89 : f32 to vector<16x64xf32>
    %318 = arith.select %315, %316, %317 : vector<16x64xi1>, vector<16x64xf32>
    %319 = math.absf %313 : vector<16x64xf32>
    %cst_90 = arith.constant 0.327591091 : f32
    %320 = vector.broadcast %cst_90 : f32 to vector<16x64xf32>
    %321 = arith.mulf %320, %319 : vector<16x64xf32>
    %cst_91 = arith.constant 1.000000e+00 : f32
    %322 = vector.broadcast %cst_91 : f32 to vector<16x64xf32>
    %323 = arith.addf %322, %321 : vector<16x64xf32>
    %cst_92 = arith.constant 1.000000e+00 : f32
    %324 = vector.broadcast %cst_92 : f32 to vector<16x64xf32>
    %325 = arith.divf %324, %323 : vector<16x64xf32>
    %cst_93 = arith.constant 1.06140542 : f32
    %326 = vector.broadcast %cst_93 : f32 to vector<16x64xf32>
    %327 = arith.mulf %326, %325 : vector<16x64xf32>
    %cst_94 = arith.constant -1.45315206 : f32
    %328 = vector.broadcast %cst_94 : f32 to vector<16x64xf32>
    %329 = arith.addf %327, %328 : vector<16x64xf32>
    %330 = arith.mulf %329, %325 : vector<16x64xf32>
    %cst_95 = arith.constant 1.42141378 : f32
    %331 = vector.broadcast %cst_95 : f32 to vector<16x64xf32>
    %332 = arith.addf %330, %331 : vector<16x64xf32>
    %333 = arith.mulf %332, %325 : vector<16x64xf32>
    %cst_96 = arith.constant -0.284496725 : f32
    %334 = vector.broadcast %cst_96 : f32 to vector<16x64xf32>
    %335 = arith.addf %333, %334 : vector<16x64xf32>
    %336 = arith.mulf %335, %325 : vector<16x64xf32>
    %cst_97 = arith.constant 0.254829586 : f32
    %337 = vector.broadcast %cst_97 : f32 to vector<16x64xf32>
    %338 = arith.addf %336, %337 : vector<16x64xf32>
    %339 = arith.mulf %338, %325 : vector<16x64xf32>
    %cst_98 = arith.constant 0.000000e+00 : f32
    %340 = vector.broadcast %cst_98 : f32 to vector<16x64xf32>
    %341 = arith.subf %340, %319 : vector<16x64xf32>
    %342 = arith.mulf %341, %319 : vector<16x64xf32>
    %343 = math.exp %342 : vector<16x64xf32>
    %344 = arith.mulf %339, %343 : vector<16x64xf32>
    %cst_99 = arith.constant 1.000000e+00 : f32
    %345 = vector.broadcast %cst_99 : f32 to vector<16x64xf32>
    %346 = arith.subf %345, %344 : vector<16x64xf32>
    %347 = arith.mulf %318, %346 : vector<16x64xf32>
    %cst_100 = arith.constant 1.000000e+00 : f32
    %348 = vector.broadcast %cst_100 : f32 to vector<16x64xf32>
    %349 = arith.addf %348, %347 : vector<16x64xf32>
    %350 = arith.mulf %311, %349 : vector<16x64xf32>
    %cst_101 = arith.constant dense<0.000000e+00> : vector<16x32xf32>
    %351 = tpu.matmul %350, %180, %cst_101 {dimension_numbers = #tpu.dot_dimension_numbers<[1], [0], [0], [1], [0, 0, 1, 1], [], []>} : vector<16x64xf32>, vector<64x32xf32>, vector<16x32xf32> -> vector<16x32xf32>
    %352 = arith.addf %286, %351 : vector<16x32xf32>
    %353 = vector.broadcast %188 : vector<1x32xf32> to vector<16x32xf32>
    %354 = arith.addf %352, %353 : vector<16x32xf32>
    %c272 = arith.constant 272 : index
    %c0_102 = arith.constant 0 : index
    %355 = vector.load %arg2[%c272, %c0_102] : memref<280x192xf32, #tpu.memory_space<vmem>>, vector<1x32xf32>
    %c273 = arith.constant 273 : index
    %c0_103 = arith.constant 0 : index
    %356 = vector.load %arg2[%c273, %c0_103] : memref<280x192xf32, #tpu.memory_space<vmem>>, vector<1x32xf32>
    %cst_104 = arith.constant dense<0.000000e+00> : vector<16xf32>
    %357 = vector.multi_reduction <add>, %354, %cst_104 [1] : vector<16x32xf32> to vector<16xf32>
    %358 = vector.shape_cast %357 : vector<16xf32> to vector<16x1xf32>
    %cst_105 = arith.constant 3.200000e+01 : f32
    %359 = vector.broadcast %cst_105 : f32 to vector<16x1xf32>
    %360 = arith.divf %358, %359 : vector<16x1xf32>
    %361 = vector.broadcast %360 : vector<16x1xf32> to vector<16x32xf32>
    %362 = arith.subf %354, %361 : vector<16x32xf32>
    %363 = arith.mulf %362, %362 : vector<16x32xf32>
    %cst_106 = arith.constant dense<0.000000e+00> : vector<16xf32>
    %364 = vector.multi_reduction <add>, %363, %cst_106 [1] : vector<16x32xf32> to vector<16xf32>
    %365 = vector.shape_cast %364 : vector<16xf32> to vector<16x1xf32>
    %cst_107 = arith.constant 3.200000e+01 : f32
    %366 = vector.broadcast %cst_107 : f32 to vector<16x1xf32>
    %367 = arith.divf %365, %366 : vector<16x1xf32>
    %cst_108 = arith.constant 9.99999997E-7 : f32
    %368 = vector.broadcast %cst_108 : f32 to vector<16x1xf32>
    %369 = arith.addf %367, %368 : vector<16x1xf32>
    %370 = math.rsqrt %369 : vector<16x1xf32>
    %371 = vector.broadcast %370 : vector<16x1xf32> to vector<16x32xf32>
    %372 = arith.mulf %362, %371 : vector<16x32xf32>
    %373 = vector.broadcast %355 : vector<1x32xf32> to vector<16x32xf32>
    %374 = arith.mulf %372, %373 : vector<16x32xf32>
    %375 = vector.broadcast %356 : vector<1x32xf32> to vector<16x32xf32>
    %376 = arith.addf %374, %375 : vector<16x32xf32>
    %c0_109 = arith.constant 0 : index
    %c0_110 = arith.constant 0 : index
    %377 = vector.load %arg3[%c0_109, %c0_110] : memref<16x32xf32, #tpu.memory_space<vmem>>, vector<16x32xf32>
    tpu.vector_store %arg3[%c0_109, %c0_110], %376 {strides = array<i32>} : memref<16x32xf32, #tpu.memory_space<vmem>>, vector<16x32xf32>,
    return
  }
  func.func @transform_0(%arg0: i32) -> (i32, i32) {
    %c0_i32 = arith.constant 0 : i32
    %c0_i32_0 = arith.constant 0 : i32
    %c0_i32_1 = arith.constant 0 : i32
    return %c0_i32, %c0_i32_0 : i32, i32
  }
  func.func @transform_1(%arg0: i32) -> (i32, i32) {
    %c0_i32 = arith.constant 0 : i32
    %c0_i32_0 = arith.constant 0 : i32
    %c0_i32_1 = arith.constant 0 : i32
    return %c0_i32, %c0_i32_0 : i32, i32
  }
  func.func @transform_2(%arg0: i32) -> (i32, i32) {
    %c0_i32 = arith.constant 0 : i32
    %c0_i32_0 = arith.constant 0 : i32
    %c0_i32_1 = arith.constant 0 : i32
    return %c0_i32, %c0_i32_0 : i32, i32
  }
  func.func @transform_3(%arg0: i32) -> (i32, i32, i32, i32) {
    %c0_i32 = arith.constant 0 : i32
    %c0_i32_0 = arith.constant 0 : i32
    %c0_i32_1 = arith.constant 0 : i32
    %c0_i32_2 = arith.constant 0 : i32
    %c0_i32_3 = arith.constant 0 : i32
    return %c0_i32, %c0_i32_0, %c0_i32_1, %c0_i32_2 : i32, i32, i32, i32
  }
}

</mosaic_0001>

<llo_original>
// kernel: transformer_encoder.1
$region0: #{transformer_encoder.1}
  #allocation0 [shape = 'u32[]', space=smem, size = 0x4, offset = 0x4, fixed_abs, tag = 'smem constant byte address 0x4 - core index']
  #allocation1 [shape = 'u32[72,128]{1,0:T(1,128)}', space=vmem, size = 0x9000, scoped, tag = 'internal scratch']
  %s0 = inlined_call_operand.hbm [shape: f32[16,32], index: 0, kind: input, shape index: {}]
  %s1 = inlined_call_operand.hbm [shape: f32[280,192], index: 1, kind: input, shape index: {}]
  %s2 = inlined_call_operand.hbm [shape: f32[16,32], index: 2, kind: output, shape index: {0}]
  %s3 = inlined_call_operand.vmem [shape: f32[2,2,8,8], index: 3, kind: output, shape index: {1}]
  %4 = xla_tuple %s2, %s3
  %s5 = sld [smem:[#allocation0]]
  $region34: #{transformer_encoder.1} parent=0
    _
  %s7 = ssub.s32 1, %s5
  %s8 = scalar_select 0, %s7, %s5
  $region1: #{transformer_encoder.1} parent=0
    #allocation2 [shape = 'u8[8192]{0}', space=vmem, size = 0x2000, scoped, tag = 'input window, operand 0, single buffered']
    #allocation3 [shape = 's32[1]{0}', space=sflag, size = 0x4, scoped, tag = 'scoped memory for transformer_encoder.1']
    #allocation4 [shape = 's32[1]{0}', space=sflag, size = 0x4, scoped, tag = 'scoped memory for transformer_encoder.1']
    #allocation5 [shape = 'u8[286720]{0}', space=vmem, size = 0x46000, scoped, tag = 'input window, operand 1, single buffered']
    #allocation6 [shape = 's32[1]{0}', space=sflag, size = 0x4, scoped, tag = 'scoped memory for transformer_encoder.1']
    #allocation7 [shape = 'u8[8192]{0}', space=vmem, size = 0x2000, scoped, tag = 'output window, operand 0, single buffered']
    %9 = vsyncpa [#allocation3], 0
    %10 = vsyncpa [#allocation6], 0
    %11 = vsyncpa [#allocation4], 0
    // Predicated region
    $region2: #{transformer_encoder.1} parent=1 // pred_check
      _
    $region3: #{transformer_encoder.1} parent=1 // pred_check_branch
      %13 = sbr.rel (0) target = $region5
    $region4: #{transformer_encoder.1} parent=1 // pred_region
      %15 = vsyncadd [#allocation3], 0
      %s16 = sshll.u32 %s0, 4
      %s17 = int_to_ptr.hbm [resolvable:$true] %s16
      %s18 = sshll.u32 [#allocation2], 4
      %s19 = int_to_ptr.vmem [resolvable:$true] %s18
      %24 = dma.hbm_to_vmem [thread:$0]  %s17, 256, %s19, [#allocation3], 128, 128, 8
    $region5: #{transformer_encoder.1} parent=1 // pred_fallthru
      _
    // Predicated region
    $region6: #{transformer_encoder.1} parent=1 // pred_check
      _
    $region7: #{transformer_encoder.1} parent=1 // pred_check_branch
      %26 = sbr.rel (0) target = $region9
    $region8: #{transformer_encoder.1} parent=1 // pred_region
      %28 = vsyncadd [#allocation6], 0
      %s29 = sshll.u32 %s1, 4
      %s30 = int_to_ptr.hbm [resolvable:$true] %s29
      %s31 = sshll.u32 [#allocation5], 4
      %s32 = int_to_ptr.vmem [resolvable:$true] %s31
      %37 = dma.hbm_to_vmem [thread:$0]  %s30, 8960, %s32, [#allocation6], 256, 256, 16
    $region9: #{transformer_encoder.1} parent=1 // pred_fallthru
      _
    // Predicated region
    $region10: #{transformer_encoder.1} parent=1 // pred_check
      _
    $region11: #{transformer_encoder.1} parent=1 // pred_check_branch
      %39 = sbr.rel (0) target = $region13
    $region12: #{transformer_encoder.1} parent=1 // pred_region
      %41 = dma.done [#allocation3], 256
    $region13: #{transformer_encoder.1} parent=1 // pred_fallthru
      _
    // Predicated region
    $region14: #{transformer_encoder.1} parent=1 // pred_check
      _
    $region15: #{transformer_encoder.1} parent=1 // pred_check_branch
      %43 = sbr.rel (0) target = $region17
    $region16: #{transformer_encoder.1} parent=1 // pred_region
      %45 = dma.done [#allocation6], 8960
    $region17: #{transformer_encoder.1} parent=1 // pred_fallthru
      _
    %v46 = vld [vmem:[#allocation2] sm:$0xff]
    %v47 = vld [vmem:[#allocation2 + $0x8] sm:$0xff]
    %v48 = vld [vmem:[#allocation5] sm:$0xff]
    %v49 = vld [vmem:[#allocation5 + $0x8] sm:$0xff]
    %v50 = vld [vmem:[#allocation5 + $0x10] sm:$0xff]
    %v51 = vld [vmem:[#allocation5 + $0x18] sm:$0xff]
    %v52 = vld [vmem:[#allocation5 + $0x20] sm:$0xff]
    %v53 = vld [vmem:[#allocation5 + $0x28] sm:$0xff]
    %v54 = vld [vmem:[#allocation5 + $0x30] sm:$0xff]
    %v55 = vld [vmem:[#allocation5 + $0x38] sm:$0xff]
    %v56 = vld [vmem:[#allocation5 + $0x40] sm:$0xff]
    %v57 = vld [vmem:[#allocation5 + $0x50] sm:$0xff]
    %v58 = vld [vmem:[#allocation5 + $0x60] sm:$0xff]
    %v59 = vld [vmem:[#allocation5 + $0x70] sm:$0xff]
    %v60 = vld [vmem:[#allocation5 + $0x80] sm:$0xff]
    %v61 = vld [vmem:[#allocation5 + $0x90] sm:$0xff]
    %v62 = vld [vmem:[#allocation5 + $0xa0] sm:$0xff]
    %v63 = vld [vmem:[#allocation5 + $0xb0] sm:$0xff]
    %v64 = vld [vmem:[#allocation5 + $0xc0] sm:$0xff]
    %v65 = vld [vmem:[#allocation5 + $0xd0] sm:$0xff]
    %v66 = vld [vmem:[#allocation5 + $0xe0] sm:$0xff]
    %v67 = vld [vmem:[#allocation5 + $0xf0] sm:$0xff]
    %v68 = vld [vmem:[#allocation5 + $0x100] ss:$0 sm:$0xff]
    %v69 = vld [vmem:[#allocation5 + $0x101] ss:$0 sm:$0xff]
    %s70 = scalar_lea.vmem [#allocation5], 258
    %v71 = vld [vmem:[%s70] ss:$8 sm:$0x3]
    %v72 = vld [vmem:[#allocation5 + $0x103] ss:$0 sm:$0xff]
    %v73 = vld [vmem:[#allocation5 + $0x104] ss:$0 sm:$0xff]
    %v74 = vld [vmem:[#allocation5 + $0x105] ss:$0 sm:$0xff]
    %v75 = vld [vmem:[#allocation5 + $0x106] ss:$0 sm:$0xff]
    %v76 = vld [vmem:[#allocation5 + $0x107] ss:$0 sm:$0xff]
    %vm77 = vcmask 261120
    %v78 = vsel %vm77, %v46, 0.0
    %79 = vadd.xlane.f32.xlu0 %v78
    %v80 = vpop.xlane.xlu0 %79
    %v81 = vsel %vm77, %v47, 0.0
    %82 = vadd.xlane.f32.xlu0 %v81
    %v83 = vpop.xlane.xlu0 %82
    %v84 = vrcp.pop 32.0
    %v85 = vmul.f32 32.0, %v84
    %v86 = vsub.f32 1.0, %v85
    %v87 = vmul.f32 %v84, %v86
    %v88 = vadd.f32 %v84, %v87
    %vm89 = vweird.f32 %v84
    %v90 = vsel %vm89, %v84, %v88
    %v91 = vmul.f32 %v80, %v90
    %v92 = vmul.f32 %v83, %v90
    %v93 = vsub.f32 %v46, %v91
    %v94 = vsub.f32 %v47, %v92
    %v95 = vmul.f32 %v93, %v93
    %v96 = vmul.f32 %v94, %v94
    %v97 = vsel %vm77, %v95, 0.0
    %98 = vadd.xlane.f32.xlu0 %v97
    %v99 = vpop.xlane.xlu0 %98
    %v100 = vsel %vm77, %v96, 0.0
    %101 = vadd.xlane.f32.xlu0 %v100
    %v102 = vpop.xlane.xlu0 %101
    %v103 = vmul.f32 %v99, %v90
    %v104 = vmul.f32 %v102, %v90
    %v105 = vadd.f32 %v103, 1e-06
    %v106 = vadd.f32 %v104, 1e-06
    %v107 = vrsqrt.pop %v105
    %v108 = vmul.f32 %v107, %v105
    %v109 = vmul.f32 %v108, %v107
    %v110 = vmul.f32 0.5, %v109
    %v111 = vsub.f32 1.5, %v110
    %v112 = vmul.f32 %v107, %v111
    %vm113 = vweird.f32 %v105
    %vm114 = vweird.f32 %v107
    %vm115 = vmor %vm113, %vm114
    %v116 = vsel %vm115, %v107, %v112
    %v117 = vrsqrt.pop %v106
    %v118 = vmul.f32 %v117, %v106
    %v119 = vmul.f32 %v118, %v117
    %v120 = vmul.f32 0.5, %v119
    %v121 = vsub.f32 1.5, %v120
    %v122 = vmul.f32 %v117, %v121
    %vm123 = vweird.f32 %v106
    %vm124 = vweird.f32 %v117
    %vm125 = vmor %vm123, %vm124
    %v126 = vsel %vm125, %v117, %v122
    %v127 = vmul.f32 %v93, %v116
    %v128 = vmul.f32 %v94, %v126
    %v129 = vmul.f32 %v127, %v68
    %v130 = vmul.f32 %v128, %v68
    %v131 = vadd.f32 %v129, %v69
    %v132 = vadd.f32 %v130, %v69
    %v134 = vperm.slane %v71, 0
    %v135 = vperm.slane %v71, 1
    %v139 = vsel %vm77, %v131, 0
    %v142 = vsel %vm77, %v132, 0
    %144 = vmatpush.msra.mxu0 0.0
    %145 = vmatpush.msra.mxu0 0.0
    %146 = vmatpush.msra.mxu0 0.0
    %147 = vmatpush.msra.mxu0 0.0
    %148 = vmatpush.msra.mxu0 0.0
    %149 = vmatpush.msra.mxu0 0.0
    %150 = vmatpush.msra.mxu0 0.0
    %151 = vmatpush.msra.mxu0 0.0
    %152 = vmatpush.msra.mxu0 0.0
    %153 = vmatpush.msra.mxu0 0.0
    %154 = vmatpush.msra.mxu0 0.0
    %155 = vmatpush.msra.mxu0 0.0
    %156 = vmatpush.msra.mxu0 %v54
    %157 = vmatpush.msra.mxu0 %v52
    %158 = vmatpush.msra.mxu0 %v50
    %159 = vmatpush.msra.mxu0 %v48
    %160 = vmatmul.f32.gmra.mxu0 %v139
    %v161 = vpop.f32.mrf.mxu0
    %v162 = vadd.f32 %v134, %v161
    %163 = vmatmul.f32.gmra.mxu0 %v142
    %v164 = vpop.f32.mrf.mxu0
    %v165 = vadd.f32 %v134, %v164
    %166 = vdwg.mxu0
    %167 = vmatpush.msra.mxu0 0.0
    %168 = vmatpush.msra.mxu0 0.0
    %169 = vmatpush.msra.mxu0 0.0
    %170 = vmatpush.msra.mxu0 0.0
    %171 = vmatpush.msra.mxu0 0.0
    %172 = vmatpush.msra.mxu0 0.0
    %173 = vmatpush.msra.mxu0 0.0
    %174 = vmatpush.msra.mxu0 0.0
    %175 = vmatpush.msra.mxu0 0.0
    %176 = vmatpush.msra.mxu0 0.0
    %177 = vmatpush.msra.mxu0 0.0
    %178 = vmatpush.msra.mxu0 0.0
    %179 = vmatpush.msra.mxu0 %v55
    %180 = vmatpush.msra.mxu0 %v53
    %181 = vmatpush.msra.mxu0 %v51
    %182 = vmatpush.msra.mxu0 %v49
    %183 = vmatmul.f32.gmra.mxu0 %v139
    %v184 = vpop.f32.mrf.mxu0
    %v185 = vadd.f32 %v135, %v184
    %186 = vmatmul.f32.gmra.mxu0 %v142
    %v187 = vpop.f32.mrf.mxu0
    %v188 = vadd.f32 %v135, %v187
    %189 = vdwg.mxu0
    %191 = vrot.lane.b32.xlu0 %v162, 120
    %v192 = vpop.permute.xlu0 %191
    %193 = vrot.lane.b32.xlu0 %v162, 112
    %v194 = vpop.permute.xlu0 %193
    %195 = vrot.lane.b32.xlu0 %v162, 104
    %v196 = vpop.permute.xlu0 %195
    %198 = vrot.lane.b32.xlu0 %v165, 120
    %v199 = vpop.permute.xlu0 %198
    %200 = vrot.lane.b32.xlu0 %v165, 112
    %v201 = vpop.permute.xlu0 %200
    %202 = vrot.lane.b32.xlu0 %v165, 104
    %v203 = vpop.permute.xlu0 %202
    %204 = vrot.lane.b32.xlu0 %v162, 96
    %v205 = vpop.permute.xlu0 %204
    %207 = vrot.lane.b32.xlu0 %v185, 64
    %v208 = vpop.permute.xlu0 %207
    %209 = vrot.lane.b32.xlu0 %v185, 32
    %v210 = vpop.permute.xlu0 %209
    %211 = vrot.lane.b32.xlu0 %v165, 96
    %v212 = vpop.permute.xlu0 %211
    %214 = vrot.lane.b32.xlu0 %v188, 64
    %v215 = vpop.permute.xlu0 %214
    %216 = vrot.lane.b32.xlu0 %v188, 32
    %v217 = vpop.permute.xlu0 %216
    %vm218 = vcmask 64512
    %v219 = vsel %vm218, %v162, 0
    %v221 = vsel %vm218, %v205, 0
    %223 = vmatpush.xpose.msra.mxu0 0.0
    %224 = vmatpush.xpose.msra.mxu0 0.0
    %225 = vmatpush.xpose.msra.mxu0 0.0
    %226 = vmatpush.xpose.msra.mxu0 0.0
    %227 = vmatpush.xpose.msra.mxu0 0.0
    %228 = vmatpush.xpose.msra.mxu0 0.0
    %229 = vmatpush.xpose.msra.mxu0 0.0
    %230 = vmatpush.xpose.msra.mxu0 0.0
    %231 = vmatpush.xpose.msra.mxu0 0.0
    %232 = vmatpush.xpose.msra.mxu0 0.0
    %233 = vmatpush.xpose.msra.mxu0 0.0
    %234 = vmatpush.xpose.msra.mxu0 0.0
    %235 = vmatpush.xpose.msra.mxu0 0.0
    %236 = vmatpush.xpose.msra.mxu0 0.0
    %237 = vmatpush.xpose.msra.mxu0 0.0
    %238 = vmatpush.xpose.msra.mxu0 %v221
    %239 = vmatmul.f32.gmra.mxu0 %v219
    %v240 = vpop.f32.mrf.mxu0
    %v241 = vadd.f32 0.0, %v240
    %242 = vdwg.mxu0
    %243 = vrot.lane.b32.xlu0 %v192, 96
    %v244 = vpop.permute.xlu0 %243
    %v245 = vsel %vm218, %v192, 0
    %v247 = vsel %vm218, %v244, 0
    %249 = vmatpush.xpose.msra.mxu0 0.0
    %250 = vmatpush.xpose.msra.mxu0 0.0
    %251 = vmatpush.xpose.msra.mxu0 0.0
    %252 = vmatpush.xpose.msra.mxu0 0.0
    %253 = vmatpush.xpose.msra.mxu0 0.0
    %254 = vmatpush.xpose.msra.mxu0 0.0
    %255 = vmatpush.xpose.msra.mxu0 0.0
    %256 = vmatpush.xpose.msra.mxu0 0.0
    %257 = vmatpush.xpose.msra.mxu0 0.0
    %258 = vmatpush.xpose.msra.mxu0 0.0
    %259 = vmatpush.xpose.msra.mxu0 0.0
    %260 = vmatpush.xpose.msra.mxu0 0.0
    %261 = vmatpush.xpose.msra.mxu0 0.0
    %262 = vmatpush.xpose.msra.mxu0 0.0
    %263 = vmatpush.xpose.msra.mxu0 0.0
    %264 = vmatpush.xpose.msra.mxu0 %v247
    %265 = vmatmul.f32.gmra.mxu0 %v245
    %v266 = vpop.f32.mrf.mxu0
    %v267 = vadd.f32 0.0, %v266
    %268 = vdwg.mxu0
    %269 = vrot.lane.b32.xlu0 %v194, 96
    %v270 = vpop.permute.xlu0 %269
    %v271 = vsel %vm218, %v194, 0
    %v273 = vsel %vm218, %v270, 0
    %275 = vmatpush.xpose.msra.mxu0 0.0
    %276 = vmatpush.xpose.msra.mxu0 0.0
    %277 = vmatpush.xpose.msra.mxu0 0.0
    %278 = vmatpush.xpose.msra.mxu0 0.0
    %279 = vmatpush.xpose.msra.mxu0 0.0
    %280 = vmatpush.xpose.msra.mxu0 0.0
    %281 = vmatpush.xpose.msra.mxu0 0.0
    %282 = vmatpush.xpose.msra.mxu0 0.0
    %283 = vmatpush.xpose.msra.mxu0 0.0
    %284 = vmatpush.xpose.msra.mxu0 0.0
    %285 = vmatpush.xpose.msra.mxu0 0.0
    %286 = vmatpush.xpose.msra.mxu0 0.0
    %287 = vmatpush.xpose.msra.mxu0 0.0
    %288 = vmatpush.xpose.msra.mxu0 0.0
    %289 = vmatpush.xpose.msra.mxu0 0.0
    %290 = vmatpush.xpose.msra.mxu0 %v273
    %291 = vmatmul.f32.gmra.mxu0 %v271
    %v292 = vpop.f32.mrf.mxu0
    %v293 = vadd.f32 0.0, %v292
    %294 = vdwg.mxu0
    %295 = vrot.lane.b32.xlu0 %v196, 96
    %v296 = vpop.permute.xlu0 %295
    %v297 = vsel %vm218, %v196, 0
    %v299 = vsel %vm218, %v296, 0
    %301 = vmatpush.xpose.msra.mxu0 0.0
    %302 = vmatpush.xpose.msra.mxu0 0.0
    %303 = vmatpush.xpose.msra.mxu0 0.0
    %304 = vmatpush.xpose.msra.mxu0 0.0
    %305 = vmatpush.xpose.msra.mxu0 0.0
    %306 = vmatpush.xpose.msra.mxu0 0.0
    %307 = vmatpush.xpose.msra.mxu0 0.0
    %308 = vmatpush.xpose.msra.mxu0 0.0
    %309 = vmatpush.xpose.msra.mxu0 0.0
    %310 = vmatpush.xpose.msra.mxu0 0.0
    %311 = vmatpush.xpose.msra.mxu0 0.0
    %312 = vmatpush.xpose.msra.mxu0 0.0
    %313 = vmatpush.xpose.msra.mxu0 0.0
    %314 = vmatpush.xpose.msra.mxu0 0.0
    %315 = vmatpush.xpose.msra.mxu0 0.0
    %316 = vmatpush.xpose.msra.mxu0 %v299
    %317 = vmatmul.f32.gmra.mxu0 %v297
    %v318 = vpop.f32.mrf.mxu0
    %v319 = vadd.f32 0.0, %v318
    %320 = vdwg.mxu0
    %v321 = vsel %vm218, %v165, 0
    %v323 = vsel %vm218, %v212, 0
    %325 = vmatpush.xpose.msra.mxu0 0.0
    %326 = vmatpush.xpose.msra.mxu0 0.0
    %327 = vmatpush.xpose.msra.mxu0 0.0
    %328 = vmatpush.xpose.msra.mxu0 0.0
    %329 = vmatpush.xpose.msra.mxu0 0.0
    %330 = vmatpush.xpose.msra.mxu0 0.0
    %331 = vmatpush.xpose.msra.mxu0 0.0
    %332 = vmatpush.xpose.msra.mxu0 0.0
    %333 = vmatpush.xpose.msra.mxu0 0.0
    %334 = vmatpush.xpose.msra.mxu0 0.0
    %335 = vmatpush.xpose.msra.mxu0 0.0
    %336 = vmatpush.xpose.msra.mxu0 0.0
    %337 = vmatpush.xpose.msra.mxu0 0.0
    %338 = vmatpush.xpose.msra.mxu0 0.0
    %339 = vmatpush.xpose.msra.mxu0 0.0
    %340 = vmatpush.xpose.msra.mxu0 %v323
    %341 = vmatmul.f32.gmra.mxu0 %v321
    %v342 = vpop.f32.mrf.mxu0
    %v343 = vadd.f32 0.0, %v342
    %344 = vdwg.mxu0
    %345 = vrot.lane.b32.xlu0 %v199, 96
    %v346 = vpop.permute.xlu0 %345
    %v347 = vsel %vm218, %v199, 0
    %v349 = vsel %vm218, %v346, 0
    %351 = vmatpush.xpose.msra.mxu0 0.0
    %352 = vmatpush.xpose.msra.mxu0 0.0
    %353 = vmatpush.xpose.msra.mxu0 0.0
    %354 = vmatpush.xpose.msra.mxu0 0.0
    %355 = vmatpush.xpose.msra.mxu0 0.0
    %356 = vmatpush.xpose.msra.mxu0 0.0
    %357 = vmatpush.xpose.msra.mxu0 0.0
    %358 = vmatpush.xpose.msra.mxu0 0.0
    %359 = vmatpush.xpose.msra.mxu0 0.0
    %360 = vmatpush.xpose.msra.mxu0 0.0
    %361 = vmatpush.xpose.msra.mxu0 0.0
    %362 = vmatpush.xpose.msra.mxu0 0.0
    %363 = vmatpush.xpose.msra.mxu0 0.0
    %364 = vmatpush.xpose.msra.mxu0 0.0
    %365 = vmatpush.xpose.msra.mxu0 0.0
    %366 = vmatpush.xpose.msra.mxu0 %v349
    %367 = vmatmul.f32.gmra.mxu0 %v347
    %v368 = vpop.f32.mrf.mxu0
    %v369 = vadd.f32 0.0, %v368
    %370 = vdwg.mxu0
    %371 = vrot.lane.b32.xlu0 %v201, 96
    %v372 = vpop.permute.xlu0 %371
    %v373 = vsel %vm218, %v201, 0
    %v375 = vsel %vm218, %v372, 0
    %377 = vmatpush.xpose.msra.mxu0 0.0
    %378 = vmatpush.xpose.msra.mxu0 0.0
    %379 = vmatpush.xpose.msra.mxu0 0.0
    %380 = vmatpush.xpose.msra.mxu0 0.0
    %381 = vmatpush.xpose.msra.mxu0 0.0
    %382 = vmatpush.xpose.msra.mxu0 0.0
    %383 = vmatpush.xpose.msra.mxu0 0.0
    %384 = vmatpush.xpose.msra.mxu0 0.0
    %385 = vmatpush.xpose.msra.mxu0 0.0
    %386 = vmatpush.xpose.msra.mxu0 0.0
    %387 = vmatpush.xpose.msra.mxu0 0.0
    %388 = vmatpush.xpose.msra.mxu0 0.0
    %389 = vmatpush.xpose.msra.mxu0 0.0
    %390 = vmatpush.xpose.msra.mxu0 0.0
    %391 = vmatpush.xpose.msra.mxu0 0.0
    %392 = vmatpush.xpose.msra.mxu0 %v375
    %393 = vmatmul.f32.gmra.mxu0 %v373
    %v394 = vpop.f32.mrf.mxu0
    %v395 = vadd.f32 0.0, %v394
    %396 = vdwg.mxu0
    %397 = vrot.lane.b32.xlu0 %v203, 96
    %v398 = vpop.permute.xlu0 %397
    %v399 = vsel %vm218, %v203, 0
    %v401 = vsel %vm218, %v398, 0
    %403 = vmatpush.xpose.msra.mxu0 0.0
    %404 = vmatpush.xpose.msra.mxu0 0.0
    %405 = vmatpush.xpose.msra.mxu0 0.0
    %406 = vmatpush.xpose.msra.mxu0 0.0
    %407 = vmatpush.xpose.msra.mxu0 0.0
    %408 = vmatpush.xpose.msra.mxu0 0.0
    %409 = vmatpush.xpose.msra.mxu0 0.0
    %410 = vmatpush.xpose.msra.mxu0 0.0
    %411 = vmatpush.xpose.msra.mxu0 0.0
    %412 = vmatpush.xpose.msra.mxu0 0.0
    %413 = vmatpush.xpose.msra.mxu0 0.0
    %414 = vmatpush.xpose.msra.mxu0 0.0
    %415 = vmatpush.xpose.msra.mxu0 0.0
    %416 = vmatpush.xpose.msra.mxu0 0.0
    %417 = vmatpush.xpose.msra.mxu0 0.0
    %418 = vmatpush.xpose.msra.mxu0 %v401
    %419 = vmatmul.f32.gmra.mxu0 %v399
    %v420 = vpop.f32.mrf.mxu0
    %v421 = vadd.f32 0.0, %v420
    %422 = vdwg.mxu0
    %v423 = vsel %vm218, %v241, -inf
    %424 = vmax.xlane.f32.xlu0 %v423
    %v425 = vpop.xlane.xlu0 %424
    %v426 = vsel %vm218, %v267, -inf
    %427 = vmax.xlane.f32.xlu0 %v426
    %v428 = vpop.xlane.xlu0 %427
    %v429 = vsel %vm218, %v293, -inf
    %430 = vmax.xlane.f32.xlu0 %v429
    %v431 = vpop.xlane.xlu0 %430
    %v432 = vsel %vm218, %v319, -inf
    %433 = vmax.xlane.f32.xlu0 %v432
    %v434 = vpop.xlane.xlu0 %433
    %v435 = vsel %vm218, %v343, -inf
    %436 = vmax.xlane.f32.xlu0 %v435
    %v437 = vpop.xlane.xlu0 %436
    %v438 = vsel %vm218, %v369, -inf
    %439 = vmax.xlane.f32.xlu0 %v438
    %v440 = vpop.xlane.xlu0 %439
    %v441 = vsel %vm218, %v395, -inf
    %442 = vmax.xlane.f32.xlu0 %v441
    %v443 = vpop.xlane.xlu0 %442
    %v444 = vsel %vm218, %v421, -inf
    %445 = vmax.xlane.f32.xlu0 %v444
    %v446 = vpop.xlane.xlu0 %445
    %v447 = vsub.f32 %v241, %v425
    %v448 = vsub.f32 %v267, %v428
    %v449 = vsub.f32 %v293, %v431
    %v450 = vsub.f32 %v319, %v434
    %v451 = vsub.f32 %v343, %v437
    %v452 = vsub.f32 %v369, %v440
    %v453 = vsub.f32 %v395, %v443
    %v454 = vsub.f32 %v421, %v446
    %v455 = vmul.f32 %v447, 1.442695
    %v456 = vpow.pop %v455
    %v457 = vmul.f32 %v448, 1.442695
    %v458 = vpow.pop %v457
    %v459 = vmul.f32 %v449, 1.442695
    %v460 = vpow.pop %v459
    %v461 = vmul.f32 %v450, 1.442695
    %v462 = vpow.pop %v461
    %v463 = vmul.f32 %v451, 1.442695
    %v464 = vpow.pop %v463
    %v465 = vmul.f32 %v452, 1.442695
    %v466 = vpow.pop %v465
    %v467 = vmul.f32 %v453, 1.442695
    %v468 = vpow.pop %v467
    %v469 = vmul.f32 %v454, 1.442695
    %v470 = vpow.pop %v469
    %v471 = vsel %vm218, %v456, 0.0
    %472 = vadd.xlane.f32.xlu0 %v471
    %v473 = vpop.xlane.xlu0 %472
    %v474 = vsel %vm218, %v458, 0.0
    %475 = vadd.xlane.f32.xlu0 %v474
    %v476 = vpop.xlane.xlu0 %475
    %v477 = vsel %vm218, %v460, 0.0
    %478 = vadd.xlane.f32.xlu0 %v477
    %v479 = vpop.xlane.xlu0 %478
    %v480 = vsel %vm218, %v462, 0.0
    %481 = vadd.xlane.f32.xlu0 %v480
    %v482 = vpop.xlane.xlu0 %481
    %v483 = vsel %vm218, %v464, 0.0
    %484 = vadd.xlane.f32.xlu0 %v483
    %v485 = vpop.xlane.xlu0 %484
    %v486 = vsel %vm218, %v466, 0.0
    %487 = vadd.xlane.f32.xlu0 %v486
    %v488 = vpop.xlane.xlu0 %487
    %v489 = vsel %vm218, %v468, 0.0
    %490 = vadd.xlane.f32.xlu0 %v489
    %v491 = vpop.xlane.xlu0 %490
    %v492 = vsel %vm218, %v470, 0.0
    %493 = vadd.xlane.f32.xlu0 %v492
    %v494 = vpop.xlane.xlu0 %493
    %v495 = vrcp.pop %v473
    %v496 = vmul.f32 %v473, %v495
    %v497 = vsub.f32 1.0, %v496
    %v498 = vmul.f32 %v495, %v497
    %v499 = vadd.f32 %v495, %v498
    %vm500 = vweird.f32 %v473
    %vm501 = vweird.f32 %v495
    %vm502 = vmor %vm500, %vm501
    %v503 = vsel %vm502, %v495, %v499
    %v504 = vand.u32 2147483647, %v473
    %vm505 = vcmp.eq.f32.partialorder %v504, 8.507059e+37
    %v506 = vand.u32 %v473, 2147483648
    %v507 = vor.u32 1.1754944e-38, %v506
    %v508 = vsel %vm505, %v507, %v503
    %v509 = vmul.f32 %v456, %v508
    %v510 = vrcp.pop %v476
    %v511 = vmul.f32 %v476, %v510
    %v512 = vsub.f32 1.0, %v511
    %v513 = vmul.f32 %v510, %v512
    %v514 = vadd.f32 %v510, %v513
    %vm515 = vweird.f32 %v476
    %vm516 = vweird.f32 %v510
    %vm517 = vmor %vm515, %vm516
    %v518 = vsel %vm517, %v510, %v514
    %v519 = vand.u32 2147483647, %v476
    %vm520 = vcmp.eq.f32.partialorder %v519, 8.507059e+37
    %v521 = vand.u32 %v476, 2147483648
    %v522 = vor.u32 1.1754944e-38, %v521
    %v523 = vsel %vm520, %v522, %v518
    %v524 = vmul.f32 %v458, %v523
    %v525 = vrcp.pop %v479
    %v526 = vmul.f32 %v479, %v525
    %v527 = vsub.f32 1.0, %v526
    %v528 = vmul.f32 %v525, %v527
    %v529 = vadd.f32 %v525, %v528
    %vm530 = vweird.f32 %v479
    %vm531 = vweird.f32 %v525
    %vm532 = vmor %vm530, %vm531
    %v533 = vsel %vm532, %v525, %v529
    %v534 = vand.u32 2147483647, %v479
    %vm535 = vcmp.eq.f32.partialorder %v534, 8.507059e+37
    %v536 = vand.u32 %v479, 2147483648
    %v537 = vor.u32 1.1754944e-38, %v536
    %v538 = vsel %vm535, %v537, %v533
    %v539 = vmul.f32 %v460, %v538
    %v540 = vrcp.pop %v482
    %v541 = vmul.f32 %v482, %v540
    %v542 = vsub.f32 1.0, %v541
    %v543 = vmul.f32 %v540, %v542
    %v544 = vadd.f32 %v540, %v543
    %vm545 = vweird.f32 %v482
    %vm546 = vweird.f32 %v540
    %vm547 = vmor %vm545, %vm546
    %v548 = vsel %vm547, %v540, %v544
    %v549 = vand.u32 2147483647, %v482
    %vm550 = vcmp.eq.f32.partialorder %v549, 8.507059e+37
    %v551 = vand.u32 %v482, 2147483648
    %v552 = vor.u32 1.1754944e-38, %v551
    %v553 = vsel %vm550, %v552, %v548
    %v554 = vmul.f32 %v462, %v553
    %v555 = vrcp.pop %v485
    %v556 = vmul.f32 %v485, %v555
    %v557 = vsub.f32 1.0, %v556
    %v558 = vmul.f32 %v555, %v557
    %v559 = vadd.f32 %v555, %v558
    %vm560 = vweird.f32 %v485
    %vm561 = vweird.f32 %v555
    %vm562 = vmor %vm560, %vm561
    %v563 = vsel %vm562, %v555, %v559
    %v564 = vand.u32 2147483647, %v485
    %vm565 = vcmp.eq.f32.partialorder %v564, 8.507059e+37
    %v566 = vand.u32 %v485, 2147483648
    %v567 = vor.u32 1.1754944e-38, %v566
    %v568 = vsel %vm565, %v567, %v563
    %v569 = vmul.f32 %v464, %v568
    %v570 = vrcp.pop %v488
    %v571 = vmul.f32 %v488, %v570
    %v572 = vsub.f32 1.0, %v571
    %v573 = vmul.f32 %v570, %v572
    %v574 = vadd.f32 %v570, %v573
    %vm575 = vweird.f32 %v488
    %vm576 = vweird.f32 %v570
    %vm577 = vmor %vm575, %vm576
    %v578 = vsel %vm577, %v570, %v574
    %v579 = vand.u32 2147483647, %v488
    %vm580 = vcmp.eq.f32.partialorder %v579, 8.507059e+37
    %v581 = vand.u32 %v488, 2147483648
    %v582 = vor.u32 1.1754944e-38, %v581
    %v583 = vsel %vm580, %v582, %v578
    %v584 = vmul.f32 %v466, %v583
    %v585 = vrcp.pop %v491
    %v586 = vmul.f32 %v491, %v585
    %v587 = vsub.f32 1.0, %v586
    %v588 = vmul.f32 %v585, %v587
    %v589 = vadd.f32 %v585, %v588
    %vm590 = vweird.f32 %v491
    %vm591 = vweird.f32 %v585
    %vm592 = vmor %vm590, %vm591
    %v593 = vsel %vm592, %v585, %v589
    %v594 = vand.u32 2147483647, %v491
    %vm595 = vcmp.eq.f32.partialorder %v594, 8.507059e+37
    %v596 = vand.u32 %v491, 2147483648
    %v597 = vor.u32 1.1754944e-38, %v596
    %v598 = vsel %vm595, %v597, %v593
    %v599 = vmul.f32 %v468, %v598
    %v600 = vrcp.pop %v494
    %v601 = vmul.f32 %v494, %v600
    %v602 = vsub.f32 1.0, %v601
    %v603 = vmul.f32 %v600, %v602
    %v604 = vadd.f32 %v600, %v603
    %vm605 = vweird.f32 %v494
    %vm606 = vweird.f32 %v600
    %vm607 = vmor %vm605, %vm606
    %v608 = vsel %vm607, %v600, %v604
    %v609 = vand.u32 2147483647, %v494
    %vm610 = vcmp.eq.f32.partialorder %v609, 8.507059e+37
    %v611 = vand.u32 %v494, 2147483648
    %v612 = vor.u32 1.1754944e-38, %v611
    %v613 = vsel %vm610, %v612, %v608
    %v614 = vmul.f32 %v470, %v613
    %615 = vrot.lane.b32.xlu0 %v162, 64
    %v616 = vpop.permute.xlu0 %615
    %v619 = vsel %vm218, %v509, 0
    %621 = vmatpush.msra.mxu0 0.0
    %622 = vmatpush.msra.mxu0 0.0
    %623 = vmatpush.msra.mxu0 0.0
    %624 = vmatpush.msra.mxu0 0.0
    %625 = vmatpush.msra.mxu0 0.0
    %626 = vmatpush.msra.mxu0 0.0
    %627 = vmatpush.msra.mxu0 0.0
    %628 = vmatpush.msra.mxu0 0.0
    %629 = vmatpush.msra.mxu0 0.0
    %630 = vmatpush.msra.mxu0 0.0
    %631 = vmatpush.msra.mxu0 0.0
    %632 = vmatpush.msra.mxu0 0.0
    %633 = vmatpush.msra.mxu0 0.0
    %634 = vmatpush.msra.mxu0 0.0
    %635 = vmatpush.msra.mxu0 0.0
    %636 = vmatpush.msra.mxu0 %v616
    %637 = vmatmul.f32.gmra.mxu0 %v619
    %v638 = vpop.f32.mrf.mxu0
    %v639 = vadd.f32 0.0, %v638
    %640 = vdwg.mxu0
    %641 = vrot.lane.b32.xlu0 %v205, 64
    %v642 = vpop.permute.xlu0 %641
    %v645 = vsel %vm218, %v524, 0
    %647 = vmatpush.msra.mxu0 0.0
    %648 = vmatpush.msra.mxu0 0.0
    %649 = vmatpush.msra.mxu0 0.0
    %650 = vmatpush.msra.mxu0 0.0
    %651 = vmatpush.msra.mxu0 0.0
    %652 = vmatpush.msra.mxu0 0.0
    %653 = vmatpush.msra.mxu0 0.0
    %654 = vmatpush.msra.mxu0 0.0
    %655 = vmatpush.msra.mxu0 0.0
    %656 = vmatpush.msra.mxu0 0.0
    %657 = vmatpush.msra.mxu0 0.0
    %658 = vmatpush.msra.mxu0 0.0
    %659 = vmatpush.msra.mxu0 0.0
    %660 = vmatpush.msra.mxu0 0.0
    %661 = vmatpush.msra.mxu0 0.0
    %662 = vmatpush.msra.mxu0 %v642
    %663 = vmatmul.f32.gmra.mxu0 %v645
    %v664 = vpop.f32.mrf.mxu0
    %v665 = vadd.f32 0.0, %v664
    %666 = vdwg.mxu0
    %667 = vrot.lane.b32.xlu0 %v208, 64
    %v668 = vpop.permute.xlu0 %667
    %v671 = vsel %vm218, %v539, 0
    %673 = vmatpush.msra.mxu0 0.0
    %674 = vmatpush.msra.mxu0 0.0
    %675 = vmatpush.msra.mxu0 0.0
    %676 = vmatpush.msra.mxu0 0.0
    %677 = vmatpush.msra.mxu0 0.0
    %678 = vmatpush.msra.mxu0 0.0
    %679 = vmatpush.msra.mxu0 0.0
    %680 = vmatpush.msra.mxu0 0.0
    %681 = vmatpush.msra.mxu0 0.0
    %682 = vmatpush.msra.mxu0 0.0
    %683 = vmatpush.msra.mxu0 0.0
    %684 = vmatpush.msra.mxu0 0.0
    %685 = vmatpush.msra.mxu0 0.0
    %686 = vmatpush.msra.mxu0 0.0
    %687 = vmatpush.msra.mxu0 0.0
    %688 = vmatpush.msra.mxu0 %v668
    %689 = vmatmul.f32.gmra.mxu0 %v671
    %v690 = vpop.f32.mrf.mxu0
    %v691 = vadd.f32 0.0, %v690
    %692 = vdwg.mxu0
    %693 = vrot.lane.b32.xlu0 %v210, 64
    %v694 = vpop.permute.xlu0 %693
    %v697 = vsel %vm218, %v554, 0
    %699 = vmatpush.msra.mxu0 0.0
    %700 = vmatpush.msra.mxu0 0.0
    %701 = vmatpush.msra.mxu0 0.0
    %702 = vmatpush.msra.mxu0 0.0
    %703 = vmatpush.msra.mxu0 0.0
    %704 = vmatpush.msra.mxu0 0.0
    %705 = vmatpush.msra.mxu0 0.0
    %706 = vmatpush.msra.mxu0 0.0
    %707 = vmatpush.msra.mxu0 0.0
    %708 = vmatpush.msra.mxu0 0.0
    %709 = vmatpush.msra.mxu0 0.0
    %710 = vmatpush.msra.mxu0 0.0
    %711 = vmatpush.msra.mxu0 0.0
    %712 = vmatpush.msra.mxu0 0.0
    %713 = vmatpush.msra.mxu0 0.0
    %714 = vmatpush.msra.mxu0 %v694
    %715 = vmatmul.f32.gmra.mxu0 %v697
    %v716 = vpop.f32.mrf.mxu0
    %v717 = vadd.f32 0.0, %v716
    %718 = vdwg.mxu0
    %719 = vrot.lane.b32.xlu0 %v165, 64
    %v720 = vpop.permute.xlu0 %719
    %v723 = vsel %vm218, %v569, 0
    %725 = vmatpush.msra.mxu0 0.0
    %726 = vmatpush.msra.mxu0 0.0
    %727 = vmatpush.msra.mxu0 0.0
    %728 = vmatpush.msra.mxu0 0.0
    %729 = vmatpush.msra.mxu0 0.0
    %730 = vmatpush.msra.mxu0 0.0
    %731 = vmatpush.msra.mxu0 0.0
    %732 = vmatpush.msra.mxu0 0.0
    %733 = vmatpush.msra.mxu0 0.0
    %734 = vmatpush.msra.mxu0 0.0
    %735 = vmatpush.msra.mxu0 0.0
    %736 = vmatpush.msra.mxu0 0.0
    %737 = vmatpush.msra.mxu0 0.0
    %738 = vmatpush.msra.mxu0 0.0
    %739 = vmatpush.msra.mxu0 0.0
    %740 = vmatpush.msra.mxu0 %v720
    %741 = vmatmul.f32.gmra.mxu0 %v723
    %v742 = vpop.f32.mrf.mxu0
    %v743 = vadd.f32 0.0, %v742
    %744 = vdwg.mxu0
    %745 = vrot.lane.b32.xlu0 %v212, 64
    %v746 = vpop.permute.xlu0 %745
    %v749 = vsel %vm218, %v584, 0
    %751 = vmatpush.msra.mxu0 0.0
    %752 = vmatpush.msra.mxu0 0.0
    %753 = vmatpush.msra.mxu0 0.0
    %754 = vmatpush.msra.mxu0 0.0
    %755 = vmatpush.msra.mxu0 0.0
    %756 = vmatpush.msra.mxu0 0.0
    %757 = vmatpush.msra.mxu0 0.0
    %758 = vmatpush.msra.mxu0 0.0
    %759 = vmatpush.msra.mxu0 0.0
    %760 = vmatpush.msra.mxu0 0.0
    %761 = vmatpush.msra.mxu0 0.0
    %762 = vmatpush.msra.mxu0 0.0
    %763 = vmatpush.msra.mxu0 0.0
    %764 = vmatpush.msra.mxu0 0.0
    %765 = vmatpush.msra.mxu0 0.0
    %766 = vmatpush.msra.mxu0 %v746
    %767 = vmatmul.f32.gmra.mxu0 %v749
    %v768 = vpop.f32.mrf.mxu0
    %v769 = vadd.f32 0.0, %v768
    %770 = vdwg.mxu0
    %771 = vrot.lane.b32.xlu0 %v215, 64
    %v772 = vpop.permute.xlu0 %771
    %v775 = vsel %vm218, %v599, 0
    %777 = vmatpush.msra.mxu0 0.0
    %778 = vmatpush.msra.mxu0 0.0
    %779 = vmatpush.msra.mxu0 0.0
    %780 = vmatpush.msra.mxu0 0.0
    %781 = vmatpush.msra.mxu0 0.0
    %782 = vmatpush.msra.mxu0 0.0
    %783 = vmatpush.msra.mxu0 0.0
    %784 = vmatpush.msra.mxu0 0.0
    %785 = vmatpush.msra.mxu0 0.0
    %786 = vmatpush.msra.mxu0 0.0
    %787 = vmatpush.msra.mxu0 0.0
    %788 = vmatpush.msra.mxu0 0.0
    %789 = vmatpush.msra.mxu0 0.0
    %790 = vmatpush.msra.mxu0 0.0
    %791 = vmatpush.msra.mxu0 0.0
    %792 = vmatpush.msra.mxu0 %v772
    %793 = vmatmul.f32.gmra.mxu0 %v775
    %v794 = vpop.f32.mrf.mxu0
    %v795 = vadd.f32 0.0, %v794
    %796 = vdwg.mxu0
    %797 = vrot.lane.b32.xlu0 %v217, 64
    %v798 = vpop.permute.xlu0 %797
    %v801 = vsel %vm218, %v614, 0
    %803 = vmatpush.msra.mxu0 0.0
    %804 = vmatpush.msra.mxu0 0.0
    %805 = vmatpush.msra.mxu0 0.0
    %806 = vmatpush.msra.mxu0 0.0
    %807 = vmatpush.msra.mxu0 0.0
    %808 = vmatpush.msra.mxu0 0.0
    %809 = vmatpush.msra.mxu0 0.0
    %810 = vmatpush.msra.mxu0 0.0
    %811 = vmatpush.msra.mxu0 0.0
    %812 = vmatpush.msra.mxu0 0.0
    %813 = vmatpush.msra.mxu0 0.0
    %814 = vmatpush.msra.mxu0 0.0
    %815 = vmatpush.msra.mxu0 0.0
    %816 = vmatpush.msra.mxu0 0.0
    %817 = vmatpush.msra.mxu0 0.0
    %818 = vmatpush.msra.mxu0 %v798
    %819 = vmatmul.f32.gmra.mxu0 %v801
    %v820 = vpop.f32.mrf.mxu0
    %v821 = vadd.f32 0.0, %v820
    %822 = vdwg.mxu0
    %v823 = vsel %vm77, %v639, 0.0
    %v824 = vsel %vm77, %v665, 0.0
    %v825 = vadd.f32 %v823, %v824
    %v826 = vsel %vm77, %v691, 0.0
    %v827 = vadd.f32 %v825, %v826
    %v828 = vsel %vm77, %v717, 0.0
    %v829 = vadd.f32 %v827, %v828
    %v830 = vsel %vm77, %v743, 0.0
    %v831 = vsel %vm77, %v769, 0.0
    %v832 = vadd.f32 %v830, %v831
    %v833 = vsel %vm77, %v795, 0.0
    %v834 = vadd.f32 %v832, %v833
    %v835 = vsel %vm77, %v821, 0.0
    %v836 = vadd.f32 %v834, %v835
    %v837 = vadd.f32 %v829, %v72
    %v838 = vadd.f32 %v836, %v72
    %v839 = vsel %vm218, %v509, 0.0
    %v840 = vsel %vm218, %v524, 0.0
    %v841 = vadd.f32 %v839, %v840
    %v842 = vsel %vm218, %v539, 0.0
    %v843 = vadd.f32 %v841, %v842
    %v844 = vsel %vm218, %v554, 0.0
    %v845 = vadd.f32 %v843, %v844
    %v846 = vsel %vm218, %v569, 0.0
    %v847 = vsel %vm218, %v584, 0.0
    %v848 = vadd.f32 %v846, %v847
    %v849 = vsel %vm218, %v599, 0.0
    %v850 = vadd.f32 %v848, %v849
    %v851 = vsel %vm218, %v614, 0.0
    %v852 = vadd.f32 %v850, %v851
    %v853 = vrcp.pop 4.0
    %v854 = vmul.f32 4.0, %v853
    %v855 = vsub.f32 1.0, %v854
    %v856 = vmul.f32 %v853, %v855
    %v857 = vadd.f32 %v853, %v856
    %vm858 = vweird.f32 %v853
    %v859 = vsel %vm858, %v853, %v857
    %v860 = vmul.f32 %v845, %v859
    %v861 = vmul.f32 %v852, %v859
    %862 = vst.msk [vmem:[%s3] sm:$0xff] %vm218, %v860
    %863 = vst.msk [vmem:[%s3 + $0x8] sm:$0xff] %vm218, %v861
    %v864 = vadd.f32 %v46, %v837
    %v865 = vadd.f32 %v47, %v838
    %v866 = vsel %vm77, %v864, 0.0
    %867 = vadd.xlane.f32.xlu0 %v866
    %v868 = vpop.xlane.xlu0 %867
    %v869 = vsel %vm77, %v865, 0.0
    %870 = vadd.xlane.f32.xlu0 %v869
    %v871 = vpop.xlane.xlu0 %870
    %v872 = vmul.f32 %v868, %v90
    %v873 = vmul.f32 %v871, %v90
    %v874 = vsub.f32 %v864, %v872
    %v875 = vsub.f32 %v865, %v873
    %v876 = vmul.f32 %v874, %v874
    %v877 = vmul.f32 %v875, %v875
    %v878 = vsel %vm77, %v876, 0.0
    %879 = vadd.xlane.f32.xlu0 %v878
    %v880 = vpop.xlane.xlu0 %879
    %v881 = vsel %vm77, %v877, 0.0
    %882 = vadd.xlane.f32.xlu0 %v881
    %v883 = vpop.xlane.xlu0 %882
    %v884 = vmul.f32 %v880, %v90
    %v885 = vmul.f32 %v883, %v90
    %v886 = vadd.f32 %v884, 1e-06
    %v887 = vadd.f32 %v885, 1e-06
    %v888 = vrsqrt.pop %v886
    %v889 = vmul.f32 %v888, %v886
    %v890 = vmul.f32 %v889, %v888
    %v891 = vmul.f32 0.5, %v890
    %v892 = vsub.f32 1.5, %v891
    %v893 = vmul.f32 %v888, %v892
    %vm894 = vweird.f32 %v886
    %vm895 = vweird.f32 %v888
    %vm896 = vmor %vm894, %vm895
    %v897 = vsel %vm896, %v888, %v893
    %v898 = vrsqrt.pop %v887
    %v899 = vmul.f32 %v898, %v887
    %v900 = vmul.f32 %v899, %v898
    %v901 = vmul.f32 0.5, %v900
    %v902 = vsub.f32 1.5, %v901
    %v903 = vmul.f32 %v898, %v902
    %vm904 = vweird.f32 %v887
    %vm905 = vweird.f32 %v898
    %vm906 = vmor %vm904, %vm905
    %v907 = vsel %vm906, %v898, %v903
    %v908 = vmul.f32 %v874, %v897
    %v909 = vmul.f32 %v875, %v907
    %v910 = vmul.f32 %v908, %v73
    %v911 = vmul.f32 %v909, %v73
    %v912 = vadd.f32 %v910, %v74
    %v913 = vadd.f32 %v911, %v74
    %v915 = vsel %vm77, %v912, 0
    %v918 = vsel %vm77, %v913, 0
    %920 = vmatpush.msra.mxu0 0.0
    %921 = vmatpush.msra.mxu0 0.0
    %922 = vmatpush.msra.mxu0 0.0
    %923 = vmatpush.msra.mxu0 0.0
    %924 = vmatpush.msra.mxu0 0.0
    %925 = vmatpush.msra.mxu0 0.0
    %926 = vmatpush.msra.mxu0 0.0
    %927 = vmatpush.msra.mxu0 0.0
    %928 = vmatpush.msra.mxu0 0.0
    %929 = vmatpush.msra.mxu0 0.0
    %930 = vmatpush.msra.mxu0 0.0
    %931 = vmatpush.msra.mxu0 0.0
    %932 = vmatpush.msra.mxu0 %v59
    %933 = vmatpush.msra.mxu0 %v58
    %934 = vmatpush.msra.mxu0 %v57
    %935 = vmatpush.msra.mxu0 %v56
    %936 = vmatmul.f32.gmra.mxu0 %v915
    %v937 = vpop.f32.mrf.mxu0
    %v938 = vadd.f32 %v75, %v937
    %939 = vmatmul.f32.gmra.mxu0 %v918
    %v940 = vpop.f32.mrf.mxu0
    %v941 = vadd.f32 %v75, %v940
    %942 = vdwg.mxu0
    %v943 = vmul.f32 %v938, 0.5
    %v944 = vmul.f32 %v941, 0.5
    %v945 = vmul.f32 %v938, 0.70710677
    %v946 = vmul.f32 %v941, 0.70710677
    %vm947 = vcmp.ge.f32.partialorder %v945, 0.0
    %vm948 = vcmp.ge.f32.partialorder %v946, 0.0
    %v949 = vsel %vm947, 1.0, -1.0
    %v950 = vsel %vm948, 1.0, -1.0
    %v951 = vand.u32 2147483647, %v945
    %v952 = vand.u32 2147483647, %v946
    %v953 = vmul.f32 %v951, 0.3275911
    %v954 = vmul.f32 %v952, 0.3275911
    %v955 = vadd.f32 %v953, 1.0
    %v956 = vadd.f32 %v954, 1.0
    %v957 = vrcp.pop %v955
    %v958 = vmul.f32 %v955, %v957
    %v959 = vsub.f32 1.0, %v958
    %v960 = vmul.f32 %v957, %v959
    %v961 = vadd.f32 %v957, %v960
    %vm962 = vweird.f32 %v955
    %vm963 = vweird.f32 %v957
    %vm964 = vmor %vm962, %vm963
    %v965 = vsel %vm964, %v957, %v961
    %v966 = vand.u32 2147483647, %v955
    %vm967 = vcmp.eq.f32.partialorder %v966, 8.507059e+37
    %v968 = vand.u32 %v955, 2147483648
    %v969 = vor.u32 1.1754944e-38, %v968
    %v970 = vsel %vm967, %v969, %v965
    %v971 = vmul.f32 1.0, %v970
    %v972 = vrcp.pop %v956
    %v973 = vmul.f32 %v956, %v972
    %v974 = vsub.f32 1.0, %v973
    %v975 = vmul.f32 %v972, %v974
    %v976 = vadd.f32 %v972, %v975
    %vm977 = vweird.f32 %v956
    %vm978 = vweird.f32 %v972
    %vm979 = vmor %vm977, %vm978
    %v980 = vsel %vm979, %v972, %v976
    %v981 = vand.u32 2147483647, %v956
    %vm982 = vcmp.eq.f32.partialorder %v981, 8.507059e+37
    %v983 = vand.u32 %v956, 2147483648
    %v984 = vor.u32 1.1754944e-38, %v983
    %v985 = vsel %vm982, %v984, %v980
    %v986 = vmul.f32 1.0, %v985
    %v987 = vmul.f32 %v971, 1.0614054
    %v988 = vmul.f32 %v986, 1.0614054
    %v989 = vadd.f32 %v987, -1.4531521
    %v990 = vadd.f32 %v988, -1.4531521
    %v991 = vmul.f32 %v989, %v971
    %v992 = vmul.f32 %v990, %v986
    %v993 = vadd.f32 %v991, 1.4214138
    %v994 = vadd.f32 %v992, 1.4214138
    %v995 = vmul.f32 %v993, %v971
    %v996 = vmul.f32 %v994, %v986
    %v997 = vadd.f32 %v995, -0.28449672
    %v998 = vadd.f32 %v996, -0.28449672
    %v999 = vmul.f32 %v997, %v971
    %v1000 = vmul.f32 %v998, %v986
    %v1001 = vadd.f32 %v999, 0.2548296
    %v1002 = vadd.f32 %v1000, 0.2548296
    %v1003 = vmul.f32 %v1001, %v971
    %v1004 = vmul.f32 %v1002, %v986
    %v1005 = vsub.f32 0.0, %v951
    %v1006 = vsub.f32 0.0, %v952
    %v1007 = vmul.f32 %v1005, %v951
    %v1008 = vmul.f32 %v1006, %v952
    %v1009 = vmul.f32 %v1007, 1.442695
    %v1010 = vpow.pop %v1009
    %v1011 = vmul.f32 %v1008, 1.442695
    %v1012 = vpow.pop %v1011
    %v1013 = vmul.f32 %v1003, %v1010
    %v1014 = vmul.f32 %v1004, %v1012
    %v1015 = vsub.f32 1.0, %v1013
    %v1016 = vsub.f32 1.0, %v1014
    %v1017 = vmul.f32 %v949, %v1015
    %v1018 = vmul.f32 %v950, %v1016
    %v1019 = vadd.f32 %v1017, 1.0
    %v1020 = vadd.f32 %v1018, 1.0
    %v1021 = vmul.f32 %v943, %v1019
    %v1022 = vmul.f32 %v944, %v1020
    %vm1023 = vcmask 523264
    %v1025 = vsel %vm1023, %v1021, 0
    %v1028 = vsel %vm1023, %v1022, 0
    %1030 = vmatpush.msra.mxu0 0.0
    %1031 = vmatpush.msra.mxu0 0.0
    %1032 = vmatpush.msra.mxu0 0.0
    %1033 = vmatpush.msra.mxu0 0.0
    %1034 = vmatpush.msra.mxu0 0.0
    %1035 = vmatpush.msra.mxu0 0.0
    %1036 = vmatpush.msra.mxu0 0.0
    %1037 = vmatpush.msra.mxu0 0.0
    %1038 = vmatpush.msra.mxu0 %v67
    %1039 = vmatpush.msra.mxu0 %v66
    %1040 = vmatpush.msra.mxu0 %v65
    %1041 = vmatpush.msra.mxu0 %v64
    %1042 = vmatpush.msra.mxu0 %v63
    %1043 = vmatpush.msra.mxu0 %v62
    %1044 = vmatpush.msra.mxu0 %v61
    %1045 = vmatpush.msra.mxu0 %v60
    %1046 = vmatmul.f32.gmra.mxu0 %v1025
    %v1047 = vpop.f32.mrf.mxu0
    %v1048 = vadd.f32 0.0, %v1047
    %1049 = vmatmul.f32.gmra.mxu0 %v1028
    %v1050 = vpop.f32.mrf.mxu0
    %v1051 = vadd.f32 0.0, %v1050
    %1052 = vdwg.mxu0
    %v1053 = vadd.f32 %v864, %v1048
    %v1054 = vadd.f32 %v865, %v1051
    %v1055 = vadd.f32 %v1053, %v76
    %v1056 = vadd.f32 %v1054, %v76
    %v1057 = vld [vmem:[#allocation5 + $0x110] sm:$0xff]
    %v1058 = vld [vmem:[#allocation5 + $0x118] sm:$0xff]
    %v1059 = vld [vmem:[#allocation5 + $0x120] sm:$0xff]
    %v1060 = vld [vmem:[#allocation5 + $0x128] sm:$0xff]
    %v1061 = vld [vmem:[#allocation5 + $0x130] sm:$0xff]
    %v1062 = vld [vmem:[#allocation5 + $0x138] sm:$0xff]
    %v1063 = vld [vmem:[#allocation5 + $0x140] sm:$0xff]
    %v1064 = vld [vmem:[#allocation5 + $0x148] sm:$0xff]
    %v1065 = vld [vmem:[#allocation5 + $0x150] sm:$0xff]
    %v1066 = vld [vmem:[#allocation5 + $0x160] sm:$0xff]
    %v1067 = vld [vmem:[#allocation5 + $0x170] sm:$0xff]
    %v1068 = vld [vmem:[#allocation5 + $0x180] sm:$0xff]
    %v1069 = vld [vmem:[#allocation5 + $0x190] sm:$0xff]
    %v1070 = vld [vmem:[#allocation5 + $0x1a0] sm:$0xff]
    %v1071 = vld [vmem:[#allocation5 + $0x1b0] sm:$0xff]
    %v1072 = vld [vmem:[#allocation5 + $0x1c0] sm:$0xff]
    %v1073 = vld [vmem:[#allocation5 + $0x1d0] sm:$0xff]
    %v1074 = vld [vmem:[#allocation5 + $0x1e0] sm:$0xff]
    %v1075 = vld [vmem:[#allocation5 + $0x1f0] sm:$0xff]
    %v1076 = vld [vmem:[#allocation5 + $0x200] sm:$0xff]
    %v1077 = vld [vmem:[#allocation5 + $0x210] ss:$0 sm:$0xff]
    %v1078 = vld [vmem:[#allocation5 + $0x211] ss:$0 sm:$0xff]
    %s1079 = scalar_lea.vmem [#allocation5], 530
    %v1080 = vld [vmem:[%s1079] ss:$8 sm:$0x3]
    %v1081 = vld [vmem:[#allocation5 + $0x213] ss:$0 sm:$0xff]
    %v1082 = vld [vmem:[#allocation5 + $0x214] ss:$0 sm:$0xff]
    %v1083 = vld [vmem:[#allocation5 + $0x215] ss:$0 sm:$0xff]
    %v1084 = vld [vmem:[#allocation5 + $0x216] ss:$0 sm:$0xff]
    %v1085 = vld [vmem:[#allocation5 + $0x217] ss:$0 sm:$0xff]
    %v1086 = vsel %vm77, %v1055, 0.0
    %1087 = vadd.xlane.f32.xlu0 %v1086
    %v1088 = vpop.xlane.xlu0 %1087
    %v1089 = vsel %vm77, %v1056, 0.0
    %1090 = vadd.xlane.f32.xlu0 %v1089
    %v1091 = vpop.xlane.xlu0 %1090
    %v1092 = vmul.f32 %v1088, %v90
    %v1093 = vmul.f32 %v1091, %v90
    %v1094 = vsub.f32 %v1055, %v1092
    %v1095 = vsub.f32 %v1056, %v1093
    %v1096 = vmul.f32 %v1094, %v1094
    %v1097 = vmul.f32 %v1095, %v1095
    %v1098 = vsel %vm77, %v1096, 0.0
    %1099 = vadd.xlane.f32.xlu0 %v1098
    %v1100 = vpop.xlane.xlu0 %1099
    %v1101 = vsel %vm77, %v1097, 0.0
    %1102 = vadd.xlane.f32.xlu0 %v1101
    %v1103 = vpop.xlane.xlu0 %1102
    %v1104 = vmul.f32 %v1100, %v90
    %v1105 = vmul.f32 %v1103, %v90
    %v1106 = vadd.f32 %v1104, 1e-06
    %v1107 = vadd.f32 %v1105, 1e-06
    %v1108 = vrsqrt.pop %v1106
    %v1109 = vmul.f32 %v1108, %v1106
    %v1110 = vmul.f32 %v1109, %v1108
    %v1111 = vmul.f32 0.5, %v1110
    %v1112 = vsub.f32 1.5, %v1111
    %v1113 = vmul.f32 %v1108, %v1112
    %vm1114 = vweird.f32 %v1106
    %vm1115 = vweird.f32 %v1108
    %vm1116 = vmor %vm1114, %vm1115
    %v1117 = vsel %vm1116, %v1108, %v1113
    %v1118 = vrsqrt.pop %v1107
    %v1119 = vmul.f32 %v1118, %v1107
    %v1120 = vmul.f32 %v1119, %v1118
    %v1121 = vmul.f32 0.5, %v1120
    %v1122 = vsub.f32 1.5, %v1121
    %v1123 = vmul.f32 %v1118, %v1122
    %vm1124 = vweird.f32 %v1107
    %vm1125 = vweird.f32 %v1118
    %vm1126 = vmor %vm1124, %vm1125
    %v1127 = vsel %vm1126, %v1118, %v1123
    %v1128 = vmul.f32 %v1094, %v1117
    %v1129 = vmul.f32 %v1095, %v1127
    %v1130 = vmul.f32 %v1128, %v1077
    %v1131 = vmul.f32 %v1129, %v1077
    %v1132 = vadd.f32 %v1130, %v1078
    %v1133 = vadd.f32 %v1131, %v1078
    %v1135 = vperm.slane %v1080, 0
    %v1136 = vperm.slane %v1080, 1
    %v1140 = vsel %vm77, %v1132, 0
    %v1143 = vsel %vm77, %v1133, 0
    %1145 = vmatpush.msra.mxu0 0.0
    %1146 = vmatpush.msra.mxu0 0.0
    %1147 = vmatpush.msra.mxu0 0.0
    %1148 = vmatpush.msra.mxu0 0.0
    %1149 = vmatpush.msra.mxu0 0.0
    %1150 = vmatpush.msra.mxu0 0.0
    %1151 = vmatpush.msra.mxu0 0.0
    %1152 = vmatpush.msra.mxu0 0.0
    %1153 = vmatpush.msra.mxu0 0.0
    %1154 = vmatpush.msra.mxu0 0.0
    %1155 = vmatpush.msra.mxu0 0.0
    %1156 = vmatpush.msra.mxu0 0.0
    %1157 = vmatpush.msra.mxu0 %v1063
    %1158 = vmatpush.msra.mxu0 %v1061
    %1159 = vmatpush.msra.mxu0 %v1059
    %1160 = vmatpush.msra.mxu0 %v1057
    %1161 = vmatmul.f32.gmra.mxu0 %v1140
    %v1162 = vpop.f32.mrf.mxu0
    %v1163 = vadd.f32 %v1135, %v1162
    %1164 = vmatmul.f32.gmra.mxu0 %v1143
    %v1165 = vpop.f32.mrf.mxu0
    %v1166 = vadd.f32 %v1135, %v1165
    %1167 = vdwg.mxu0
    %1168 = vmatpush.msra.mxu0 0.0
    %1169 = vmatpush.msra.mxu0 0.0
    %1170 = vmatpush.msra.mxu0 0.0
    %1171 = vmatpush.msra.mxu0 0.0
    %1172 = vmatpush.msra.mxu0 0.0
    %1173 = vmatpush.msra.mxu0 0.0
    %1174 = vmatpush.msra.mxu0 0.0
    %1175 = vmatpush.msra.mxu0 0.0
    %1176 = vmatpush.msra.mxu0 0.0
    %1177 = vmatpush.msra.mxu0 0.0
    %1178 = vmatpush.msra.mxu0 0.0
    %1179 = vmatpush.msra.mxu0 0.0
    %1180 = vmatpush.msra.mxu0 %v1064
    %1181 = vmatpush.msra.mxu0 %v1062
    %1182 = vmatpush.msra.mxu0 %v1060
    %1183 = vmatpush.msra.mxu0 %v1058
    %1184 = vmatmul.f32.gmra.mxu0 %v1140
    %v1185 = vpop.f32.mrf.mxu0
    %v1186 = vadd.f32 %v1136, %v1185
    %1187 = vmatmul.f32.gmra.mxu0 %v1143
    %v1188 = vpop.f32.mrf.mxu0
    %v1189 = vadd.f32 %v1136, %v1188
    %1190 = vdwg.mxu0
    %1192 = vrot.lane.b32.xlu0 %v1163, 120
    %v1193 = vpop.permute.xlu0 %1192
    %1194 = vrot.lane.b32.xlu0 %v1163, 112
    %v1195 = vpop.permute.xlu0 %1194
    %1196 = vrot.lane.b32.xlu0 %v1163, 104
    %v1197 = vpop.permute.xlu0 %1196
    %1199 = vrot.lane.b32.xlu0 %v1166, 120
    %v1200 = vpop.permute.xlu0 %1199
    %1201 = vrot.lane.b32.xlu0 %v1166, 112
    %v1202 = vpop.permute.xlu0 %1201
    %1203 = vrot.lane.b32.xlu0 %v1166, 104
    %v1204 = vpop.permute.xlu0 %1203
    %1205 = vrot.lane.b32.xlu0 %v1163, 96
    %v1206 = vpop.permute.xlu0 %1205
    %1208 = vrot.lane.b32.xlu0 %v1186, 64
    %v1209 = vpop.permute.xlu0 %1208
    %1210 = vrot.lane.b32.xlu0 %v1186, 32
    %v1211 = vpop.permute.xlu0 %1210
    %1212 = vrot.lane.b32.xlu0 %v1166, 96
    %v1213 = vpop.permute.xlu0 %1212
    %1215 = vrot.lane.b32.xlu0 %v1189, 64
    %v1216 = vpop.permute.xlu0 %1215
    %1217 = vrot.lane.b32.xlu0 %v1189, 32
    %v1218 = vpop.permute.xlu0 %1217
    %v1219 = vsel %vm218, %v1163, 0
    %v1221 = vsel %vm218, %v1206, 0
    %1223 = vmatpush.xpose.msra.mxu0 0.0
    %1224 = vmatpush.xpose.msra.mxu0 0.0
    %1225 = vmatpush.xpose.msra.mxu0 0.0
    %1226 = vmatpush.xpose.msra.mxu0 0.0
    %1227 = vmatpush.xpose.msra.mxu0 0.0
    %1228 = vmatpush.xpose.msra.mxu0 0.0
    %1229 = vmatpush.xpose.msra.mxu0 0.0
    %1230 = vmatpush.xpose.msra.mxu0 0.0
    %1231 = vmatpush.xpose.msra.mxu0 0.0
    %1232 = vmatpush.xpose.msra.mxu0 0.0
    %1233 = vmatpush.xpose.msra.mxu0 0.0
    %1234 = vmatpush.xpose.msra.mxu0 0.0
    %1235 = vmatpush.xpose.msra.mxu0 0.0
    %1236 = vmatpush.xpose.msra.mxu0 0.0
    %1237 = vmatpush.xpose.msra.mxu0 0.0
    %1238 = vmatpush.xpose.msra.mxu0 %v1221
    %1239 = vmatmul.f32.gmra.mxu0 %v1219
    %v1240 = vpop.f32.mrf.mxu0
    %v1241 = vadd.f32 0.0, %v1240
    %1242 = vdwg.mxu0
    %1243 = vrot.lane.b32.xlu0 %v1193, 96
    %v1244 = vpop.permute.xlu0 %1243
    %v1245 = vsel %vm218, %v1193, 0
    %v1247 = vsel %vm218, %v1244, 0
    %1249 = vmatpush.xpose.msra.mxu0 0.0
    %1250 = vmatpush.xpose.msra.mxu0 0.0
    %1251 = vmatpush.xpose.msra.mxu0 0.0
    %1252 = vmatpush.xpose.msra.mxu0 0.0
    %1253 = vmatpush.xpose.msra.mxu0 0.0
    %1254 = vmatpush.xpose.msra.mxu0 0.0
    %1255 = vmatpush.xpose.msra.mxu0 0.0
    %1256 = vmatpush.xpose.msra.mxu0 0.0
    %1257 = vmatpush.xpose.msra.mxu0 0.0
    %1258 = vmatpush.xpose.msra.mxu0 0.0
    %1259 = vmatpush.xpose.msra.mxu0 0.0
    %1260 = vmatpush.xpose.msra.mxu0 0.0
    %1261 = vmatpush.xpose.msra.mxu0 0.0
    %1262 = vmatpush.xpose.msra.mxu0 0.0
    %1263 = vmatpush.xpose.msra.mxu0 0.0
    %1264 = vmatpush.xpose.msra.mxu0 %v1247
    %1265 = vmatmul.f32.gmra.mxu0 %v1245
    %v1266 = vpop.f32.mrf.mxu0
    %v1267 = vadd.f32 0.0, %v1266
    %1268 = vdwg.mxu0
    %1269 = vrot.lane.b32.xlu0 %v1195, 96
    %v1270 = vpop.permute.xlu0 %1269
    %v1271 = vsel %vm218, %v1195, 0
    %v1273 = vsel %vm218, %v1270, 0
    %1275 = vmatpush.xpose.msra.mxu0 0.0
    %1276 = vmatpush.xpose.msra.mxu0 0.0
    %1277 = vmatpush.xpose.msra.mxu0 0.0
    %1278 = vmatpush.xpose.msra.mxu0 0.0
    %1279 = vmatpush.xpose.msra.mxu0 0.0
    %1280 = vmatpush.xpose.msra.mxu0 0.0
    %1281 = vmatpush.xpose.msra.mxu0 0.0
    %1282 = vmatpush.xpose.msra.mxu0 0.0
    %1283 = vmatpush.xpose.msra.mxu0 0.0
    %1284 = vmatpush.xpose.msra.mxu0 0.0
    %1285 = vmatpush.xpose.msra.mxu0 0.0
    %1286 = vmatpush.xpose.msra.mxu0 0.0
    %1287 = vmatpush.xpose.msra.mxu0 0.0
    %1288 = vmatpush.xpose.msra.mxu0 0.0
    %1289 = vmatpush.xpose.msra.mxu0 0.0
    %1290 = vmatpush.xpose.msra.mxu0 %v1273
    %1291 = vmatmul.f32.gmra.mxu0 %v1271
    %v1292 = vpop.f32.mrf.mxu0
    %v1293 = vadd.f32 0.0, %v1292
    %1294 = vdwg.mxu0
    %1295 = vrot.lane.b32.xlu0 %v1197, 96
    %v1296 = vpop.permute.xlu0 %1295
    %v1297 = vsel %vm218, %v1197, 0
    %v1299 = vsel %vm218, %v1296, 0
    %1301 = vmatpush.xpose.msra.mxu0 0.0
    %1302 = vmatpush.xpose.msra.mxu0 0.0
    %1303 = vmatpush.xpose.msra.mxu0 0.0
    %1304 = vmatpush.xpose.msra.mxu0 0.0
    %1305 = vmatpush.xpose.msra.mxu0 0.0
    %1306 = vmatpush.xpose.msra.mxu0 0.0
    %1307 = vmatpush.xpose.msra.mxu0 0.0
    %1308 = vmatpush.xpose.msra.mxu0 0.0
    %1309 = vmatpush.xpose.msra.mxu0 0.0
    %1310 = vmatpush.xpose.msra.mxu0 0.0
    %1311 = vmatpush.xpose.msra.mxu0 0.0
    %1312 = vmatpush.xpose.msra.mxu0 0.0
    %1313 = vmatpush.xpose.msra.mxu0 0.0
    %1314 = vmatpush.xpose.msra.mxu0 0.0
    %1315 = vmatpush.xpose.msra.mxu0 0.0
    %1316 = vmatpush.xpose.msra.mxu0 %v1299
    %1317 = vmatmul.f32.gmra.mxu0 %v1297
    %v1318 = vpop.f32.mrf.mxu0
    %v1319 = vadd.f32 0.0, %v1318
    %1320 = vdwg.mxu0
    %v1321 = vsel %vm218, %v1166, 0
    %v1323 = vsel %vm218, %v1213, 0
    %1325 = vmatpush.xpose.msra.mxu0 0.0
    %1326 = vmatpush.xpose.msra.mxu0 0.0
    %1327 = vmatpush.xpose.msra.mxu0 0.0
    %1328 = vmatpush.xpose.msra.mxu0 0.0
    %1329 = vmatpush.xpose.msra.mxu0 0.0
    %1330 = vmatpush.xpose.msra.mxu0 0.0
    %1331 = vmatpush.xpose.msra.mxu0 0.0
    %1332 = vmatpush.xpose.msra.mxu0 0.0
    %1333 = vmatpush.xpose.msra.mxu0 0.0
    %1334 = vmatpush.xpose.msra.mxu0 0.0
    %1335 = vmatpush.xpose.msra.mxu0 0.0
    %1336 = vmatpush.xpose.msra.mxu0 0.0
    %1337 = vmatpush.xpose.msra.mxu0 0.0
    %1338 = vmatpush.xpose.msra.mxu0 0.0
    %1339 = vmatpush.xpose.msra.mxu0 0.0
    %1340 = vmatpush.xpose.msra.mxu0 %v1323
    %1341 = vmatmul.f32.gmra.mxu0 %v1321
    %v1342 = vpop.f32.mrf.mxu0
    %v1343 = vadd.f32 0.0, %v1342
    %1344 = vdwg.mxu0
    %1345 = vrot.lane.b32.xlu0 %v1200, 96
    %v1346 = vpop.permute.xlu0 %1345
    %v1347 = vsel %vm218, %v1200, 0
    %v1349 = vsel %vm218, %v1346, 0
    %1351 = vmatpush.xpose.msra.mxu0 0.0
    %1352 = vmatpush.xpose.msra.mxu0 0.0
    %1353 = vmatpush.xpose.msra.mxu0 0.0
    %1354 = vmatpush.xpose.msra.mxu0 0.0
    %1355 = vmatpush.xpose.msra.mxu0 0.0
    %1356 = vmatpush.xpose.msra.mxu0 0.0
    %1357 = vmatpush.xpose.msra.mxu0 0.0
    %1358 = vmatpush.xpose.msra.mxu0 0.0
    %1359 = vmatpush.xpose.msra.mxu0 0.0
    %1360 = vmatpush.xpose.msra.mxu0 0.0
    %1361 = vmatpush.xpose.msra.mxu0 0.0
    %1362 = vmatpush.xpose.msra.mxu0 0.0
    %1363 = vmatpush.xpose.msra.mxu0 0.0
    %1364 = vmatpush.xpose.msra.mxu0 0.0
    %1365 = vmatpush.xpose.msra.mxu0 0.0
    %1366 = vmatpush.xpose.msra.mxu0 %v1349
    %1367 = vmatmul.f32.gmra.mxu0 %v1347
    %v1368 = vpop.f32.mrf.mxu0
    %v1369 = vadd.f32 0.0, %v1368
    %1370 = vdwg.mxu0
    %1371 = vrot.lane.b32.xlu0 %v1202, 96
    %v1372 = vpop.permute.xlu0 %1371
    %v1373 = vsel %vm218, %v1202, 0
    %v1375 = vsel %vm218, %v1372, 0
    %1377 = vmatpush.xpose.msra.mxu0 0.0
    %1378 = vmatpush.xpose.msra.mxu0 0.0
    %1379 = vmatpush.xpose.msra.mxu0 0.0
    %1380 = vmatpush.xpose.msra.mxu0 0.0
    %1381 = vmatpush.xpose.msra.mxu0 0.0
    %1382 = vmatpush.xpose.msra.mxu0 0.0
    %1383 = vmatpush.xpose.msra.mxu0 0.0
    %1384 = vmatpush.xpose.msra.mxu0 0.0
    %1385 = vmatpush.xpose.msra.mxu0 0.0
    %1386 = vmatpush.xpose.msra.mxu0 0.0
    %1387 = vmatpush.xpose.msra.mxu0 0.0
    %1388 = vmatpush.xpose.msra.mxu0 0.0
    %1389 = vmatpush.xpose.msra.mxu0 0.0
    %1390 = vmatpush.xpose.msra.mxu0 0.0
    %1391 = vmatpush.xpose.msra.mxu0 0.0
    %1392 = vmatpush.xpose.msra.mxu0 %v1375
    %1393 = vmatmul.f32.gmra.mxu0 %v1373
    %v1394 = vpop.f32.mrf.mxu0
    %v1395 = vadd.f32 0.0, %v1394
    %1396 = vdwg.mxu0
    %1397 = vrot.lane.b32.xlu0 %v1204, 96
    %v1398 = vpop.permute.xlu0 %1397
    %v1399 = vsel %vm218, %v1204, 0
    %v1401 = vsel %vm218, %v1398, 0
    %1403 = vmatpush.xpose.msra.mxu0 0.0
    %1404 = vmatpush.xpose.msra.mxu0 0.0
    %1405 = vmatpush.xpose.msra.mxu0 0.0
    %1406 = vmatpush.xpose.msra.mxu0 0.0
    %1407 = vmatpush.xpose.msra.mxu0 0.0
    %1408 = vmatpush.xpose.msra.mxu0 0.0
    %1409 = vmatpush.xpose.msra.mxu0 0.0
    %1410 = vmatpush.xpose.msra.mxu0 0.0
    %1411 = vmatpush.xpose.msra.mxu0 0.0
    %1412 = vmatpush.xpose.msra.mxu0 0.0
    %1413 = vmatpush.xpose.msra.mxu0 0.0
    %1414 = vmatpush.xpose.msra.mxu0 0.0
    %1415 = vmatpush.xpose.msra.mxu0 0.0
    %1416 = vmatpush.xpose.msra.mxu0 0.0
    %1417 = vmatpush.xpose.msra.mxu0 0.0
    %1418 = vmatpush.xpose.msra.mxu0 %v1401
    %1419 = vmatmul.f32.gmra.mxu0 %v1399
    %v1420 = vpop.f32.mrf.mxu0
    %v1421 = vadd.f32 0.0, %v1420
    %1422 = vdwg.mxu0
    %v1423 = vsel %vm218, %v1241, -inf
    %1424 = vmax.xlane.f32.xlu0 %v1423
    %v1425 = vpop.xlane.xlu0 %1424
    %v1426 = vsel %vm218, %v1267, -inf
    %1427 = vmax.xlane.f32.xlu0 %v1426
    %v1428 = vpop.xlane.xlu0 %1427
    %v1429 = vsel %vm218, %v1293, -inf
    %1430 = vmax.xlane.f32.xlu0 %v1429
    %v1431 = vpop.xlane.xlu0 %1430
    %v1432 = vsel %vm218, %v1319, -inf
    %1433 = vmax.xlane.f32.xlu0 %v1432
    %v1434 = vpop.xlane.xlu0 %1433
    %v1435 = vsel %vm218, %v1343, -inf
    %1436 = vmax.xlane.f32.xlu0 %v1435
    %v1437 = vpop.xlane.xlu0 %1436
    %v1438 = vsel %vm218, %v1369, -inf
    %1439 = vmax.xlane.f32.xlu0 %v1438
    %v1440 = vpop.xlane.xlu0 %1439
    %v1441 = vsel %vm218, %v1395, -inf
    %1442 = vmax.xlane.f32.xlu0 %v1441
    %v1443 = vpop.xlane.xlu0 %1442
    %v1444 = vsel %vm218, %v1421, -inf
    %1445 = vmax.xlane.f32.xlu0 %v1444
    %v1446 = vpop.xlane.xlu0 %1445
    %v1447 = vsub.f32 %v1241, %v1425
    %v1448 = vsub.f32 %v1267, %v1428
    %v1449 = vsub.f32 %v1293, %v1431
    %v1450 = vsub.f32 %v1319, %v1434
    %v1451 = vsub.f32 %v1343, %v1437
    %v1452 = vsub.f32 %v1369, %v1440
    %v1453 = vsub.f32 %v1395, %v1443
    %v1454 = vsub.f32 %v1421, %v1446
    %v1455 = vmul.f32 %v1447, 1.442695
    %v1456 = vpow.pop %v1455
    %v1457 = vmul.f32 %v1448, 1.442695
    %v1458 = vpow.pop %v1457
    %v1459 = vmul.f32 %v1449, 1.442695
    %v1460 = vpow.pop %v1459
    %v1461 = vmul.f32 %v1450, 1.442695
    %v1462 = vpow.pop %v1461
    %v1463 = vmul.f32 %v1451, 1.442695
    %v1464 = vpow.pop %v1463
    %v1465 = vmul.f32 %v1452, 1.442695
    %v1466 = vpow.pop %v1465
    %v1467 = vmul.f32 %v1453, 1.442695
    %v1468 = vpow.pop %v1467
    %v1469 = vmul.f32 %v1454, 1.442695
    %v1470 = vpow.pop %v1469
    %v1471 = vsel %vm218, %v1456, 0.0
    %1472 = vadd.xlane.f32.xlu0 %v1471
    %v1473 = vpop.xlane.xlu0 %1472
    %v1474 = vsel %vm218, %v1458, 0.0
    %1475 = vadd.xlane.f32.xlu0 %v1474
    %v1476 = vpop.xlane.xlu0 %1475
    %v1477 = vsel %vm218, %v1460, 0.0
    %1478 = vadd.xlane.f32.xlu0 %v1477
    %v1479 = vpop.xlane.xlu0 %1478
    %v1480 = vsel %vm218, %v1462, 0.0
    %1481 = vadd.xlane.f32.xlu0 %v1480
    %v1482 = vpop.xlane.xlu0 %1481
    %v1483 = vsel %vm218, %v1464, 0.0
    %1484 = vadd.xlane.f32.xlu0 %v1483
    %v1485 = vpop.xlane.xlu0 %1484
    %v1486 = vsel %vm218, %v1466, 0.0
    %1487 = vadd.xlane.f32.xlu0 %v1486
    %v1488 = vpop.xlane.xlu0 %1487
    %v1489 = vsel %vm218, %v1468, 0.0
    %1490 = vadd.xlane.f32.xlu0 %v1489
    %v1491 = vpop.xlane.xlu0 %1490
    %v1492 = vsel %vm218, %v1470, 0.0
    %1493 = vadd.xlane.f32.xlu0 %v1492
    %v1494 = vpop.xlane.xlu0 %1493
    %v1495 = vrcp.pop %v1473
    %v1496 = vmul.f32 %v1473, %v1495
    %v1497 = vsub.f32 1.0, %v1496
    %v1498 = vmul.f32 %v1495, %v1497
    %v1499 = vadd.f32 %v1495, %v1498
    %vm1500 = vweird.f32 %v1473
    %vm1501 = vweird.f32 %v1495
    %vm1502 = vmor %vm1500, %vm1501
    %v1503 = vsel %vm1502, %v1495, %v1499
    %v1504 = vand.u32 2147483647, %v1473
    %vm1505 = vcmp.eq.f32.partialorder %v1504, 8.507059e+37
    %v1506 = vand.u32 %v1473, 2147483648
    %v1507 = vor.u32 1.1754944e-38, %v1506
    %v1508 = vsel %vm1505, %v1507, %v1503
    %v1509 = vmul.f32 %v1456, %v1508
    %v1510 = vrcp.pop %v1476
    %v1511 = vmul.f32 %v1476, %v1510
    %v1512 = vsub.f32 1.0, %v1511
    %v1513 = vmul.f32 %v1510, %v1512
    %v1514 = vadd.f32 %v1510, %v1513
    %vm1515 = vweird.f32 %v1476
    %vm1516 = vweird.f32 %v1510
    %vm1517 = vmor %vm1515, %vm1516
    %v1518 = vsel %vm1517, %v1510, %v1514
    %v1519 = vand.u32 2147483647, %v1476
    %vm1520 = vcmp.eq.f32.partialorder %v1519, 8.507059e+37
    %v1521 = vand.u32 %v1476, 2147483648
    %v1522 = vor.u32 1.1754944e-38, %v1521
    %v1523 = vsel %vm1520, %v1522, %v1518
    %v1524 = vmul.f32 %v1458, %v1523
    %v1525 = vrcp.pop %v1479
    %v1526 = vmul.f32 %v1479, %v1525
    %v1527 = vsub.f32 1.0, %v1526
    %v1528 = vmul.f32 %v1525, %v1527
    %v1529 = vadd.f32 %v1525, %v1528
    %vm1530 = vweird.f32 %v1479
    %vm1531 = vweird.f32 %v1525
    %vm1532 = vmor %vm1530, %vm1531
    %v1533 = vsel %vm1532, %v1525, %v1529
    %v1534 = vand.u32 2147483647, %v1479
    %vm1535 = vcmp.eq.f32.partialorder %v1534, 8.507059e+37
    %v1536 = vand.u32 %v1479, 2147483648
    %v1537 = vor.u32 1.1754944e-38, %v1536
    %v1538 = vsel %vm1535, %v1537, %v1533
    %v1539 = vmul.f32 %v1460, %v1538
    %v1540 = vrcp.pop %v1482
    %v1541 = vmul.f32 %v1482, %v1540
    %v1542 = vsub.f32 1.0, %v1541
    %v1543 = vmul.f32 %v1540, %v1542
    %v1544 = vadd.f32 %v1540, %v1543
    %vm1545 = vweird.f32 %v1482
    %vm1546 = vweird.f32 %v1540
    %vm1547 = vmor %vm1545, %vm1546
    %v1548 = vsel %vm1547, %v1540, %v1544
    %v1549 = vand.u32 2147483647, %v1482
    %vm1550 = vcmp.eq.f32.partialorder %v1549, 8.507059e+37
    %v1551 = vand.u32 %v1482, 2147483648
    %v1552 = vor.u32 1.1754944e-38, %v1551
    %v1553 = vsel %vm1550, %v1552, %v1548
    %v1554 = vmul.f32 %v1462, %v1553
    %v1555 = vrcp.pop %v1485
    %v1556 = vmul.f32 %v1485, %v1555
    %v1557 = vsub.f32 1.0, %v1556
    %v1558 = vmul.f32 %v1555, %v1557
    %v1559 = vadd.f32 %v1555, %v1558
    %vm1560 = vweird.f32 %v1485
    %vm1561 = vweird.f32 %v1555
    %vm1562 = vmor %vm1560, %vm1561
    %v1563 = vsel %vm1562, %v1555, %v1559
    %v1564 = vand.u32 2147483647, %v1485
    %vm1565 = vcmp.eq.f32.partialorder %v1564, 8.507059e+37
    %v1566 = vand.u32 %v1485, 2147483648
    %v1567 = vor.u32 1.1754944e-38, %v1566
    %v1568 = vsel %vm1565, %v1567, %v1563
    %v1569 = vmul.f32 %v1464, %v1568
    %v1570 = vrcp.pop %v1488
    %v1571 = vmul.f32 %v1488, %v1570
    %v1572 = vsub.f32 1.0, %v1571
    %v1573 = vmul.f32 %v1570, %v1572
    %v1574 = vadd.f32 %v1570, %v1573
    %vm1575 = vweird.f32 %v1488
    %vm1576 = vweird.f32 %v1570
    %vm1577 = vmor %vm1575, %vm1576
    %v1578 = vsel %vm1577, %v1570, %v1574
    %v1579 = vand.u32 2147483647, %v1488
    %vm1580 = vcmp.eq.f32.partialorder %v1579, 8.507059e+37
    %v1581 = vand.u32 %v1488, 2147483648
    %v1582 = vor.u32 1.1754944e-38, %v1581
    %v1583 = vsel %vm1580, %v1582, %v1578
    %v1584 = vmul.f32 %v1466, %v1583
    %v1585 = vrcp.pop %v1491
    %v1586 = vmul.f32 %v1491, %v1585
    %v1587 = vsub.f32 1.0, %v1586
    %v1588 = vmul.f32 %v1585, %v1587
    %v1589 = vadd.f32 %v1585, %v1588
    %vm1590 = vweird.f32 %v1491
    %vm1591 = vweird.f32 %v1585
    %vm1592 = vmor %vm1590, %vm1591
    %v1593 = vsel %vm1592, %v1585, %v1589
    %v1594 = vand.u32 2147483647, %v1491
    %vm1595 = vcmp.eq.f32.partialorder %v1594, 8.507059e+37
    %v1596 = vand.u32 %v1491, 2147483648
    %v1597 = vor.u32 1.1754944e-38, %v1596
    %v1598 = vsel %vm1595, %v1597, %v1593
    %v1599 = vmul.f32 %v1468, %v1598
    %v1600 = vrcp.pop %v1494
    %v1601 = vmul.f32 %v1494, %v1600
    %v1602 = vsub.f32 1.0, %v1601
    %v1603 = vmul.f32 %v1600, %v1602
    %v1604 = vadd.f32 %v1600, %v1603
    %vm1605 = vweird.f32 %v1494
    %vm1606 = vweird.f32 %v1600
    %vm1607 = vmor %vm1605, %vm1606
    %v1608 = vsel %vm1607, %v1600, %v1604
    %v1609 = vand.u32 2147483647, %v1494
    %vm1610 = vcmp.eq.f32.partialorder %v1609, 8.507059e+37
    %v1611 = vand.u32 %v1494, 2147483648
    %v1612 = vor.u32 1.1754944e-38, %v1611
    %v1613 = vsel %vm1610, %v1612, %v1608
    %v1614 = vmul.f32 %v1470, %v1613
    %1615 = vrot.lane.b32.xlu0 %v1163, 64
    %v1616 = vpop.permute.xlu0 %1615
    %v1619 = vsel %vm218, %v1509, 0
    %1621 = vmatpush.msra.mxu0 0.0
    %1622 = vmatpush.msra.mxu0 0.0
    %1623 = vmatpush.msra.mxu0 0.0
    %1624 = vmatpush.msra.mxu0 0.0
    %1625 = vmatpush.msra.mxu0 0.0
    %1626 = vmatpush.msra.mxu0 0.0
    %1627 = vmatpush.msra.mxu0 0.0
    %1628 = vmatpush.msra.mxu0 0.0
    %1629 = vmatpush.msra.mxu0 0.0
    %1630 = vmatpush.msra.mxu0 0.0
    %1631 = vmatpush.msra.mxu0 0.0
    %1632 = vmatpush.msra.mxu0 0.0
    %1633 = vmatpush.msra.mxu0 0.0
    %1634 = vmatpush.msra.mxu0 0.0
    %1635 = vmatpush.msra.mxu0 0.0
    %1636 = vmatpush.msra.mxu0 %v1616
    %1637 = vmatmul.f32.gmra.mxu0 %v1619
    %v1638 = vpop.f32.mrf.mxu0
    %v1639 = vadd.f32 0.0, %v1638
    %1640 = vdwg.mxu0
    %1641 = vrot.lane.b32.xlu0 %v1206, 64
    %v1642 = vpop.permute.xlu0 %1641
    %v1645 = vsel %vm218, %v1524, 0
    %1647 = vmatpush.msra.mxu0 0.0
    %1648 = vmatpush.msra.mxu0 0.0
    %1649 = vmatpush.msra.mxu0 0.0
    %1650 = vmatpush.msra.mxu0 0.0
    %1651 = vmatpush.msra.mxu0 0.0
    %1652 = vmatpush.msra.mxu0 0.0
    %1653 = vmatpush.msra.mxu0 0.0
    %1654 = vmatpush.msra.mxu0 0.0
    %1655 = vmatpush.msra.mxu0 0.0
    %1656 = vmatpush.msra.mxu0 0.0
    %1657 = vmatpush.msra.mxu0 0.0
    %1658 = vmatpush.msra.mxu0 0.0
    %1659 = vmatpush.msra.mxu0 0.0
    %1660 = vmatpush.msra.mxu0 0.0
    %1661 = vmatpush.msra.mxu0 0.0
    %1662 = vmatpush.msra.mxu0 %v1642
    %1663 = vmatmul.f32.gmra.mxu0 %v1645
    %v1664 = vpop.f32.mrf.mxu0
    %v1665 = vadd.f32 0.0, %v1664
    %1666 = vdwg.mxu0
    %1667 = vrot.lane.b32.xlu0 %v1209, 64
    %v1668 = vpop.permute.xlu0 %1667
    %v1671 = vsel %vm218, %v1539, 0
    %1673 = vmatpush.msra.mxu0 0.0
    %1674 = vmatpush.msra.mxu0 0.0
    %1675 = vmatpush.msra.mxu0 0.0
    %1676 = vmatpush.msra.mxu0 0.0
    %1677 = vmatpush.msra.mxu0 0.0
    %1678 = vmatpush.msra.mxu0 0.0
    %1679 = vmatpush.msra.mxu0 0.0
    %1680 = vmatpush.msra.mxu0 0.0
    %1681 = vmatpush.msra.mxu0 0.0
    %1682 = vmatpush.msra.mxu0 0.0
    %1683 = vmatpush.msra.mxu0 0.0
    %1684 = vmatpush.msra.mxu0 0.0
    %1685 = vmatpush.msra.mxu0 0.0
    %1686 = vmatpush.msra.mxu0 0.0
    %1687 = vmatpush.msra.mxu0 0.0
    %1688 = vmatpush.msra.mxu0 %v1668
    %1689 = vmatmul.f32.gmra.mxu0 %v1671
    %v1690 = vpop.f32.mrf.mxu0
    %v1691 = vadd.f32 0.0, %v1690
    %1692 = vdwg.mxu0
    %1693 = vrot.lane.b32.xlu0 %v1211, 64
    %v1694 = vpop.permute.xlu0 %1693
    %v1697 = vsel %vm218, %v1554, 0
    %1699 = vmatpush.msra.mxu0 0.0
    %1700 = vmatpush.msra.mxu0 0.0
    %1701 = vmatpush.msra.mxu0 0.0
    %1702 = vmatpush.msra.mxu0 0.0
    %1703 = vmatpush.msra.mxu0 0.0
    %1704 = vmatpush.msra.mxu0 0.0
    %1705 = vmatpush.msra.mxu0 0.0
    %1706 = vmatpush.msra.mxu0 0.0
    %1707 = vmatpush.msra.mxu0 0.0
    %1708 = vmatpush.msra.mxu0 0.0
    %1709 = vmatpush.msra.mxu0 0.0
    %1710 = vmatpush.msra.mxu0 0.0
    %1711 = vmatpush.msra.mxu0 0.0
    %1712 = vmatpush.msra.mxu0 0.0
    %1713 = vmatpush.msra.mxu0 0.0
    %1714 = vmatpush.msra.mxu0 %v1694
    %1715 = vmatmul.f32.gmra.mxu0 %v1697
    %v1716 = vpop.f32.mrf.mxu0
    %v1717 = vadd.f32 0.0, %v1716
    %1718 = vdwg.mxu0
    %1719 = vrot.lane.b32.xlu0 %v1166, 64
    %v1720 = vpop.permute.xlu0 %1719
    %v1723 = vsel %vm218, %v1569, 0
    %1725 = vmatpush.msra.mxu0 0.0
    %1726 = vmatpush.msra.mxu0 0.0
    %1727 = vmatpush.msra.mxu0 0.0
    %1728 = vmatpush.msra.mxu0 0.0
    %1729 = vmatpush.msra.mxu0 0.0
    %1730 = vmatpush.msra.mxu0 0.0
    %1731 = vmatpush.msra.mxu0 0.0
    %1732 = vmatpush.msra.mxu0 0.0
    %1733 = vmatpush.msra.mxu0 0.0
    %1734 = vmatpush.msra.mxu0 0.0
    %1735 = vmatpush.msra.mxu0 0.0
    %1736 = vmatpush.msra.mxu0 0.0
    %1737 = vmatpush.msra.mxu0 0.0
    %1738 = vmatpush.msra.mxu0 0.0
    %1739 = vmatpush.msra.mxu0 0.0
    %1740 = vmatpush.msra.mxu0 %v1720
    %1741 = vmatmul.f32.gmra.mxu0 %v1723
    %v1742 = vpop.f32.mrf.mxu0
    %v1743 = vadd.f32 0.0, %v1742
    %1744 = vdwg.mxu0
    %1745 = vrot.lane.b32.xlu0 %v1213, 64
    %v1746 = vpop.permute.xlu0 %1745
    %v1749 = vsel %vm218, %v1584, 0
    %1751 = vmatpush.msra.mxu0 0.0
    %1752 = vmatpush.msra.mxu0 0.0
    %1753 = vmatpush.msra.mxu0 0.0
    %1754 = vmatpush.msra.mxu0 0.0
    %1755 = vmatpush.msra.mxu0 0.0
    %1756 = vmatpush.msra.mxu0 0.0
    %1757 = vmatpush.msra.mxu0 0.0
    %1758 = vmatpush.msra.mxu0 0.0
    %1759 = vmatpush.msra.mxu0 0.0
    %1760 = vmatpush.msra.mxu0 0.0
    %1761 = vmatpush.msra.mxu0 0.0
    %1762 = vmatpush.msra.mxu0 0.0
    %1763 = vmatpush.msra.mxu0 0.0
    %1764 = vmatpush.msra.mxu0 0.0
    %1765 = vmatpush.msra.mxu0 0.0
    %1766 = vmatpush.msra.mxu0 %v1746
    %1767 = vmatmul.f32.gmra.mxu0 %v1749
    %v1768 = vpop.f32.mrf.mxu0
    %v1769 = vadd.f32 0.0, %v1768
    %1770 = vdwg.mxu0
    %1771 = vrot.lane.b32.xlu0 %v1216, 64
    %v1772 = vpop.permute.xlu0 %1771
    %v1775 = vsel %vm218, %v1599, 0
    %1777 = vmatpush.msra.mxu0 0.0
    %1778 = vmatpush.msra.mxu0 0.0
    %1779 = vmatpush.msra.mxu0 0.0
    %1780 = vmatpush.msra.mxu0 0.0
    %1781 = vmatpush.msra.mxu0 0.0
    %1782 = vmatpush.msra.mxu0 0.0
    %1783 = vmatpush.msra.mxu0 0.0
    %1784 = vmatpush.msra.mxu0 0.0
    %1785 = vmatpush.msra.mxu0 0.0
    %1786 = vmatpush.msra.mxu0 0.0
    %1787 = vmatpush.msra.mxu0 0.0
    %1788 = vmatpush.msra.mxu0 0.0
    %1789 = vmatpush.msra.mxu0 0.0
    %1790 = vmatpush.msra.mxu0 0.0
    %1791 = vmatpush.msra.mxu0 0.0
    %1792 = vmatpush.msra.mxu0 %v1772
    %1793 = vmatmul.f32.gmra.mxu0 %v1775
    %v1794 = vpop.f32.mrf.mxu0
    %v1795 = vadd.f32 0.0, %v1794
    %1796 = vdwg.mxu0
    %1797 = vrot.lane.b32.xlu0 %v1218, 64
    %v1798 = vpop.permute.xlu0 %1797
    %v1801 = vsel %vm218, %v1614, 0
    %1803 = vmatpush.msra.mxu0 0.0
    %1804 = vmatpush.msra.mxu0 0.0
    %1805 = vmatpush.msra.mxu0 0.0
    %1806 = vmatpush.msra.mxu0 0.0
    %1807 = vmatpush.msra.mxu0 0.0
    %1808 = vmatpush.msra.mxu0 0.0
    %1809 = vmatpush.msra.mxu0 0.0
    %1810 = vmatpush.msra.mxu0 0.0
    %1811 = vmatpush.msra.mxu0 0.0
    %1812 = vmatpush.msra.mxu0 0.0
    %1813 = vmatpush.msra.mxu0 0.0
    %1814 = vmatpush.msra.mxu0 0.0
    %1815 = vmatpush.msra.mxu0 0.0
    %1816 = vmatpush.msra.mxu0 0.0
    %1817 = vmatpush.msra.mxu0 0.0
    %1818 = vmatpush.msra.mxu0 %v1798
    %1819 = vmatmul.f32.gmra.mxu0 %v1801
    %v1820 = vpop.f32.mrf.mxu0
    %v1821 = vadd.f32 0.0, %v1820
    %1822 = vdwg.mxu0
    %v1823 = vsel %vm77, %v1639, 0.0
    %v1824 = vsel %vm77, %v1665, 0.0
    %v1825 = vadd.f32 %v1823, %v1824
    %v1826 = vsel %vm77, %v1691, 0.0
    %v1827 = vadd.f32 %v1825, %v1826
    %v1828 = vsel %vm77, %v1717, 0.0
    %v1829 = vadd.f32 %v1827, %v1828
    %v1830 = vsel %vm77, %v1743, 0.0
    %v1831 = vsel %vm77, %v1769, 0.0
    %v1832 = vadd.f32 %v1830, %v1831
    %v1833 = vsel %vm77, %v1795, 0.0
    %v1834 = vadd.f32 %v1832, %v1833
    %v1835 = vsel %vm77, %v1821, 0.0
    %v1836 = vadd.f32 %v1834, %v1835
    %v1837 = vadd.f32 %v1829, %v1081
    %v1838 = vadd.f32 %v1836, %v1081
    %v1839 = vsel %vm218, %v1509, 0.0
    %v1840 = vsel %vm218, %v1524, 0.0
    %v1841 = vadd.f32 %v1839, %v1840
    %v1842 = vsel %vm218, %v1539, 0.0
    %v1843 = vadd.f32 %v1841, %v1842
    %v1844 = vsel %vm218, %v1554, 0.0
    %v1845 = vadd.f32 %v1843, %v1844
    %v1846 = vsel %vm218, %v1569, 0.0
    %v1847 = vsel %vm218, %v1584, 0.0
    %v1848 = vadd.f32 %v1846, %v1847
    %v1849 = vsel %vm218, %v1599, 0.0
    %v1850 = vadd.f32 %v1848, %v1849
    %v1851 = vsel %vm218, %v1614, 0.0
    %v1852 = vadd.f32 %v1850, %v1851
    %v1853 = vmul.f32 %v1845, %v859
    %v1854 = vmul.f32 %v1852, %v859
    %s1855 = scalar_lea.vmem %s3, 16
    %1856 = vst.msk [vmem:[%s1855] sm:$0xff] %vm218, %v1853
    %1857 = vst.msk [vmem:[%s1855 + $0x8] sm:$0xff] %vm218, %v1854
    %v1858 = vadd.f32 %v1055, %v1837
    %v1859 = vadd.f32 %v1056, %v1838
    %v1860 = vsel %vm77, %v1858, 0.0
    %1861 = vadd.xlane.f32.xlu0 %v1860
    %v1862 = vpop.xlane.xlu0 %1861
    %v1863 = vsel %vm77, %v1859, 0.0
    %1864 = vadd.xlane.f32.xlu0 %v1863
    %v1865 = vpop.xlane.xlu0 %1864
    %v1866 = vmul.f32 %v1862, %v90
    %v1867 = vmul.f32 %v1865, %v90
    %v1868 = vsub.f32 %v1858, %v1866
    %v1869 = vsub.f32 %v1859, %v1867
    %v1870 = vmul.f32 %v1868, %v1868
    %v1871 = vmul.f32 %v1869, %v1869
    %v1872 = vsel %vm77, %v1870, 0.0
    %1873 = vadd.xlane.f32.xlu0 %v1872
    %v1874 = vpop.xlane.xlu0 %1873
    %v1875 = vsel %vm77, %v1871, 0.0
    %1876 = vadd.xlane.f32.xlu0 %v1875
    %v1877 = vpop.xlane.xlu0 %1876
    %v1878 = vmul.f32 %v1874, %v90
    %v1879 = vmul.f32 %v1877, %v90
    %v1880 = vadd.f32 %v1878, 1e-06
    %v1881 = vadd.f32 %v1879, 1e-06
    %v1882 = vrsqrt.pop %v1880
    %v1883 = vmul.f32 %v1882, %v1880
    %v1884 = vmul.f32 %v1883, %v1882
    %v1885 = vmul.f32 0.5, %v1884
    %v1886 = vsub.f32 1.5, %v1885
    %v1887 = vmul.f32 %v1882, %v1886
    %vm1888 = vweird.f32 %v1880
    %vm1889 = vweird.f32 %v1882
    %vm1890 = vmor %vm1888, %vm1889
    %v1891 = vsel %vm1890, %v1882, %v1887
    %v1892 = vrsqrt.pop %v1881
    %v1893 = vmul.f32 %v1892, %v1881
    %v1894 = vmul.f32 %v1893, %v1892
    %v1895 = vmul.f32 0.5, %v1894
    %v1896 = vsub.f32 1.5, %v1895
    %v1897 = vmul.f32 %v1892, %v1896
    %vm1898 = vweird.f32 %v1881
    %vm1899 = vweird.f32 %v1892
    %vm1900 = vmor %vm1898, %vm1899
    %v1901 = vsel %vm1900, %v1892, %v1897
    %v1902 = vmul.f32 %v1868, %v1891
    %v1903 = vmul.f32 %v1869, %v1901
    %v1904 = vmul.f32 %v1902, %v1082
    %v1905 = vmul.f32 %v1903, %v1082
    %v1906 = vadd.f32 %v1904, %v1083
    %v1907 = vadd.f32 %v1905, %v1083
    %v1909 = vsel %vm77, %v1906, 0
    %v1912 = vsel %vm77, %v1907, 0
    %1914 = vmatpush.msra.mxu0 0.0
    %1915 = vmatpush.msra.mxu0 0.0
    %1916 = vmatpush.msra.mxu0 0.0
    %1917 = vmatpush.msra.mxu0 0.0
    %1918 = vmatpush.msra.mxu0 0.0
    %1919 = vmatpush.msra.mxu0 0.0
    %1920 = vmatpush.msra.mxu0 0.0
    %1921 = vmatpush.msra.mxu0 0.0
    %1922 = vmatpush.msra.mxu0 0.0
    %1923 = vmatpush.msra.mxu0 0.0
    %1924 = vmatpush.msra.mxu0 0.0
    %1925 = vmatpush.msra.mxu0 0.0
    %1926 = vmatpush.msra.mxu0 %v1068
    %1927 = vmatpush.msra.mxu0 %v1067
    %1928 = vmatpush.msra.mxu0 %v1066
    %1929 = vmatpush.msra.mxu0 %v1065
    %1930 = vmatmul.f32.gmra.mxu0 %v1909
    %v1931 = vpop.f32.mrf.mxu0
    %v1932 = vadd.f32 %v1084, %v1931
    %1933 = vmatmul.f32.gmra.mxu0 %v1912
    %v1934 = vpop.f32.mrf.mxu0
    %v1935 = vadd.f32 %v1084, %v1934
    %1936 = vdwg.mxu0
    %v1937 = vmul.f32 %v1932, 0.5
    %v1938 = vmul.f32 %v1935, 0.5
    %v1939 = vmul.f32 %v1932, 0.70710677
    %v1940 = vmul.f32 %v1935, 0.70710677
    %vm1941 = vcmp.ge.f32.partialorder %v1939, 0.0
    %vm1942 = vcmp.ge.f32.partialorder %v1940, 0.0
    %v1943 = vsel %vm1941, 1.0, -1.0
    %v1944 = vsel %vm1942, 1.0, -1.0
    %v1945 = vand.u32 2147483647, %v1939
    %v1946 = vand.u32 2147483647, %v1940
    %v1947 = vmul.f32 %v1945, 0.3275911
    %v1948 = vmul.f32 %v1946, 0.3275911
    %v1949 = vadd.f32 %v1947, 1.0
    %v1950 = vadd.f32 %v1948, 1.0
    %v1951 = vrcp.pop %v1949
    %v1952 = vmul.f32 %v1949, %v1951
    %v1953 = vsub.f32 1.0, %v1952
    %v1954 = vmul.f32 %v1951, %v1953
    %v1955 = vadd.f32 %v1951, %v1954
    %vm1956 = vweird.f32 %v1949
    %vm1957 = vweird.f32 %v1951
    %vm1958 = vmor %vm1956, %vm1957
    %v1959 = vsel %vm1958, %v1951, %v1955
    %v1960 = vand.u32 2147483647, %v1949
    %vm1961 = vcmp.eq.f32.partialorder %v1960, 8.507059e+37
    %v1962 = vand.u32 %v1949, 2147483648
    %v1963 = vor.u32 1.1754944e-38, %v1962
    %v1964 = vsel %vm1961, %v1963, %v1959
    %v1965 = vmul.f32 1.0, %v1964
    %v1966 = vrcp.pop %v1950
    %v1967 = vmul.f32 %v1950, %v1966
    %v1968 = vsub.f32 1.0, %v1967
    %v1969 = vmul.f32 %v1966, %v1968
    %v1970 = vadd.f32 %v1966, %v1969
    %vm1971 = vweird.f32 %v1950
    %vm1972 = vweird.f32 %v1966
    %vm1973 = vmor %vm1971, %vm1972
    %v1974 = vsel %vm1973, %v1966, %v1970
    %v1975 = vand.u32 2147483647, %v1950
    %vm1976 = vcmp.eq.f32.partialorder %v1975, 8.507059e+37
    %v1977 = vand.u32 %v1950, 2147483648
    %v1978 = vor.u32 1.1754944e-38, %v1977
    %v1979 = vsel %vm1976, %v1978, %v1974
    %v1980 = vmul.f32 1.0, %v1979
    %v1981 = vmul.f32 %v1965, 1.0614054
    %v1982 = vmul.f32 %v1980, 1.0614054
    %v1983 = vadd.f32 %v1981, -1.4531521
    %v1984 = vadd.f32 %v1982, -1.4531521
    %v1985 = vmul.f32 %v1983, %v1965
    %v1986 = vmul.f32 %v1984, %v1980
    %v1987 = vadd.f32 %v1985, 1.4214138
    %v1988 = vadd.f32 %v1986, 1.4214138
    %v1989 = vmul.f32 %v1987, %v1965
    %v1990 = vmul.f32 %v1988, %v1980
    %v1991 = vadd.f32 %v1989, -0.28449672
    %v1992 = vadd.f32 %v1990, -0.28449672
    %v1993 = vmul.f32 %v1991, %v1965
    %v1994 = vmul.f32 %v1992, %v1980
    %v1995 = vadd.f32 %v1993, 0.2548296
    %v1996 = vadd.f32 %v1994, 0.2548296
    %v1997 = vmul.f32 %v1995, %v1965
    %v1998 = vmul.f32 %v1996, %v1980
    %v1999 = vsub.f32 0.0, %v1945
    %v2000 = vsub.f32 0.0, %v1946
    %v2001 = vmul.f32 %v1999, %v1945
    %v2002 = vmul.f32 %v2000, %v1946
    %v2003 = vmul.f32 %v2001, 1.442695
    %v2004 = vpow.pop %v2003
    %v2005 = vmul.f32 %v2002, 1.442695
    %v2006 = vpow.pop %v2005
    %v2007 = vmul.f32 %v1997, %v2004
    %v2008 = vmul.f32 %v1998, %v2006
    %v2009 = vsub.f32 1.0, %v2007
    %v2010 = vsub.f32 1.0, %v2008
    %v2011 = vmul.f32 %v1943, %v2009
    %v2012 = vmul.f32 %v1944, %v2010
    %v2013 = vadd.f32 %v2011, 1.0
    %v2014 = vadd.f32 %v2012, 1.0
    %v2015 = vmul.f32 %v1937, %v2013
    %v2016 = vmul.f32 %v1938, %v2014
    %v2018 = vsel %vm1023, %v2015, 0
    %v2021 = vsel %vm1023, %v2016, 0
    %2023 = vmatpush.msra.mxu0 0.0
    %2024 = vmatpush.msra.mxu0 0.0
    %2025 = vmatpush.msra.mxu0 0.0
    %2026 = vmatpush.msra.mxu0 0.0
    %2027 = vmatpush.msra.mxu0 0.0
    %2028 = vmatpush.msra.mxu0 0.0
    %2029 = vmatpush.msra.mxu0 0.0
    %2030 = vmatpush.msra.mxu0 0.0
    %2031 = vmatpush.msra.mxu0 %v1076
    %2032 = vmatpush.msra.mxu0 %v1075
    %2033 = vmatpush.msra.mxu0 %v1074
    %2034 = vmatpush.msra.mxu0 %v1073
    %2035 = vmatpush.msra.mxu0 %v1072
    %2036 = vmatpush.msra.mxu0 %v1071
    %2037 = vmatpush.msra.mxu0 %v1070
    %2038 = vmatpush.msra.mxu0 %v1069
    %2039 = vmatmul.f32.gmra.mxu0 %v2018
    %v2040 = vpop.f32.mrf.mxu0
    %v2041 = vadd.f32 0.0, %v2040
    %2042 = vmatmul.f32.gmra.mxu0 %v2021
    %v2043 = vpop.f32.mrf.mxu0
    %v2044 = vadd.f32 0.0, %v2043
    %2045 = vdwg.mxu0
    %v2046 = vadd.f32 %v1858, %v2041
    %v2047 = vadd.f32 %v1859, %v2044
    %v2048 = vadd.f32 %v2046, %v1085
    %v2049 = vadd.f32 %v2047, %v1085
    %v2050 = vld [vmem:[#allocation5 + $0x220] ss:$0 sm:$0xff]
    %v2051 = vld [vmem:[#allocation5 + $0x221] ss:$0 sm:$0xff]
    %v2052 = vsel %vm77, %v2048, 0.0
    %2053 = vadd.xlane.f32.xlu0 %v2052
    %v2054 = vpop.xlane.xlu0 %2053
    %v2055 = vsel %vm77, %v2049, 0.0
    %2056 = vadd.xlane.f32.xlu0 %v2055
    %v2057 = vpop.xlane.xlu0 %2056
    %v2058 = vmul.f32 %v2054, %v90
    %v2059 = vmul.f32 %v2057, %v90
    %v2060 = vsub.f32 %v2048, %v2058
    %v2061 = vsub.f32 %v2049, %v2059
    %v2062 = vmul.f32 %v2060, %v2060
    %v2063 = vmul.f32 %v2061, %v2061
    %v2064 = vsel %vm77, %v2062, 0.0
    %2065 = vadd.xlane.f32.xlu0 %v2064
    %v2066 = vpop.xlane.xlu0 %2065
    %v2067 = vsel %vm77, %v2063, 0.0
    %2068 = vadd.xlane.f32.xlu0 %v2067
    %v2069 = vpop.xlane.xlu0 %2068
    %v2070 = vmul.f32 %v2066, %v90
    %v2071 = vmul.f32 %v2069, %v90
    %v2072 = vadd.f32 %v2070, 1e-06
    %v2073 = vadd.f32 %v2071, 1e-06
    %v2074 = vrsqrt.pop %v2072
    %v2075 = vmul.f32 %v2074, %v2072
    %v2076 = vmul.f32 %v2075, %v2074
    %v2077 = vmul.f32 0.5, %v2076
    %v2078 = vsub.f32 1.5, %v2077
    %v2079 = vmul.f32 %v2074, %v2078
    %vm2080 = vweird.f32 %v2072
    %vm2081 = vweird.f32 %v2074
    %vm2082 = vmor %vm2080, %vm2081
    %v2083 = vsel %vm2082, %v2074, %v2079
    %v2084 = vrsqrt.pop %v2073
    %v2085 = vmul.f32 %v2084, %v2073
    %v2086 = vmul.f32 %v2085, %v2084
    %v2087 = vmul.f32 0.5, %v2086
    %v2088 = vsub.f32 1.5, %v2087
    %v2089 = vmul.f32 %v2084, %v2088
    %vm2090 = vweird.f32 %v2073
    %vm2091 = vweird.f32 %v2084
    %vm2092 = vmor %vm2090, %vm2091
    %v2093 = vsel %vm2092, %v2084, %v2089
    %v2094 = vmul.f32 %v2060, %v2083
    %v2095 = vmul.f32 %v2061, %v2093
    %v2096 = vmul.f32 %v2094, %v2050
    %v2097 = vmul.f32 %v2095, %v2050
    %v2098 = vadd.f32 %v2096, %v2051
    %v2099 = vadd.f32 %v2097, %v2051
    %2100 = vst.msk [vmem:[#allocation7] sm:$0xff] %vm77, %v2098
    %2101 = vst.msk [vmem:[#allocation7 + $0x8] sm:$0xff] %vm77, %v2099
    // Predicated region
    $region18: #{transformer_encoder.1} parent=1 // pred_check
      _
    $region19: #{transformer_encoder.1} parent=1 // pred_check_branch
      %2103 = sbr.rel (0) target = $region21
    $region20: #{transformer_encoder.1} parent=1 // pred_region
      %2105 = vsyncadd [#allocation4], 0
      %s2106 = sshll.u32 [#allocation7], 4
      %s2107 = int_to_ptr.vmem [resolvable:$true] %s2106
      %s2108 = sshll.u32 %s2, 4
      %s2109 = int_to_ptr.hbm [resolvable:$true] %s2108
      %2114 = dma.vmem_to_hbm [thread:$0]  %s2107, 256, %s2109, [#allocation4], 128, 128, 8
    $region21: #{transformer_encoder.1} parent=1 // pred_fallthru
      _
    // Predicated region
    $region22: #{transformer_encoder.1} parent=1 // pred_check
      _
    $region23: #{transformer_encoder.1} parent=1 // pred_check_branch
      %2116 = sbr.rel (0) target = $region25
    $region24: #{transformer_encoder.1} parent=1 // pred_region
      _
    $region25: #{transformer_encoder.1} parent=1 // pred_fallthru
      _
    // Predicated region
    $region26: #{transformer_encoder.1} parent=1 // pred_check
      _
    $region27: #{transformer_encoder.1} parent=1 // pred_check_branch
      %2118 = sbr.rel (0) target = $region29
    $region28: #{transformer_encoder.1} parent=1 // pred_region
      %2120 = dma.done [#allocation4], 256
    $region29: #{transformer_encoder.1} parent=1 // pred_fallthru
      _
    // Predicated region
    $region30: #{transformer_encoder.1} parent=1 // pred_check
      _
    $region31: #{transformer_encoder.1} parent=1 // pred_check_branch
      %2122 = sbr.rel (0) target = $region33
    $region32: #{transformer_encoder.1} parent=1 // pred_region
      _
    $region33: #{transformer_encoder.1} parent=1 // pred_fallthru
      _
    %2123 = vsyncpa [#allocation3], 1
    %2124 = vsyncpa [#allocation6], 1
    %2125 = vsyncpa [#allocation4], 1

</llo_original>
